<compile_context>
chip_gen: v6e
topology: v6e:2x2x1
jax: 0.10.0
libtpu: 0.0.40
codegen_flags: <defaults>
</compile_context>

<pallas_src>
import math
import functools

import jax
import jax.numpy as jnp
from jax.experimental import pallas as pl
from jax.experimental.pallas import tpu as pltpu


# ----------------------------------------------------------------------------
# Fused MHA kernel: single invocation, whole batch.
# ----------------------------------------------------------------------------
def _mha_kernel(xq_ref, xk_ref, xv_ref, w_ref, b_ref, o_ref, *, B, S, heads, d_k):
    xq = xq_ref[...]                      # (B*S, D)
    xk = xk_ref[...]
    xv = xv_ref[...]

    # Three full-width projections (Wq / bq pre-scaled by 1/sqrt(d_k) on host).
    q = jnp.dot(xq, w_ref[0], preferred_element_type=jnp.float32) + b_ref[0]
    k = jnp.dot(xk, w_ref[1], preferred_element_type=jnp.float32) + b_ref[1]
    v = jnp.dot(xv, w_ref[2], preferred_element_type=jnp.float32) + b_ref[2]

    # Per-batch, per-head attention with static slices (B=2, heads=4 unrolled).
    batch_rows = []
    for b in range(B):
        r0 = b * S
        per_head = []
        for h in range(heads):
            c0 = h * d_k
            q_bh = q[r0:r0 + S, c0:c0 + d_k]           # (S, d_k)
            k_bh = k[r0:r0 + S, c0:c0 + d_k]
            v_bh = v[r0:r0 + S, c0:c0 + d_k]

            # scores = q @ k^T (contract last axes; no explicit transpose)
            scores = jax.lax.dot_general(
                q_bh, k_bh, (((1,), (1,)), ((), ())),
                preferred_element_type=jnp.float32)    # (S, S)

            # numerically-stable softmax; approx reciprocal runs on the EUP
            m = jnp.max(scores, axis=-1, keepdims=True)
            e = jnp.exp(scores - m)
            p = e * pl.reciprocal(jnp.sum(e, axis=-1, keepdims=True), approx=True)
            # TODO(synk): dropout on `p` skipped (eval-mode identity).

            per_head.append(jnp.dot(p, v_bh, preferred_element_type=jnp.float32))
        batch_rows.append(jnp.concatenate(per_head, axis=-1))     # (S, D)

    concat = jnp.concatenate(batch_rows, axis=0)                  # (B*S, D)

    # Single output projection + bias, single lane-dense writeback.
    out = jnp.dot(concat, w_ref[3], preferred_element_type=jnp.float32) + b_ref[3]
    o_ref[...] = out.astype(o_ref.dtype)


def mha_forward(q, k, v, w_all, b_all, heads, d_k):
    """q/k/v: (B, S, D) f32 -> (B, S, D) f32 via one fused pallas_call (no grid)."""
    B, S, D = q.shape
    xq = q.reshape(B * S, D)          # contiguous reshape, no copy
    xk = k.reshape(B * S, D)
    xv = v.reshape(B * S, D)

    kern = functools.partial(_mha_kernel, B=B, S=S, heads=heads, d_k=d_k)
    vmem = pl.BlockSpec(memory_space=pltpu.MemorySpace.VMEM)

    out = pl.pallas_call(
        kern,
        out_shape=jax.ShapeDtypeStruct((B * S, D), jnp.float32),
        in_specs=[vmem, vmem, vmem, vmem, vmem],
        out_specs=vmem,
    )(xq, xk, xv, w_all, b_all)
    return out.reshape(B, S, D)


# ----------------------------------------------------------------------------
# MultiheadAttention module (parameters created deterministically in-script)
# ----------------------------------------------------------------------------
class MultiheadAttention:
    def __init__(self, heads, d_model, key, dropout=0.1):
        assert d_model % heads == 0
        self.d_model = d_model
        self.h = heads
        self.d_k = d_model // heads

        keys = jax.random.split(key, 8)
        bound = 1.0 / math.sqrt(d_model)  # PyTorch nn.Linear default init range

        def mk(kw, kb):
            # weight stored as (in, out) so the math is x @ W + b
            w = jax.random.uniform(kw, (d_model, d_model), jnp.float32, -bound, bound)
            b = jax.random.uniform(kb, (d_model,), jnp.float32, -bound, bound)
            return w, b

        self.wq, self.bq = mk(keys[0], keys[1])
        self.wk, self.bk = mk(keys[2], keys[3])
        self.wv, self.bv = mk(keys[4], keys[5])
        self.wo, self.bo = mk(keys[6], keys[7])

        # Pack kernel operands on the host:
        #   * fold 1/sqrt(d_k) into Wq / bq (free at runtime)
        #   * stack all (D, D) weights and all biases -> 2 weight DMAs total
        inv = 1.0 / math.sqrt(self.d_k)
        self.w_all = jnp.stack([self.wq * inv, self.wk, self.wv, self.wo], axis=0)
        self.b_all = jnp.stack(
            [self.bq * inv, self.bk, self.bv, self.bo], axis=0
        ).reshape(4, 1, d_model)

    def __call__(self, q, k, v, mask=None):
        assert mask is None  # TODO(synk): masked attention path not implemented
        return mha_forward(q, k, v, self.w_all, self.b_all, self.h, self.d_k)


# ----------------------------------------------------------------------------
# Reference in plain JAX for a sanity check
# ----------------------------------------------------------------------------
def reference_forward(mha, q, k, v):
    B, S, D = q.shape
    H, Dk = mha.h, mha.d_k

    def lin(x, w, b):
        return x @ w + b

    def split(x):
        return x.reshape(B, S, H, Dk).transpose(0, 2, 1, 3)

    qh = split(lin(q, mha.wq, mha.bq))
    kh = split(lin(k, mha.wk, mha.bk))
    vh = split(lin(v, mha.wv, mha.bv))
    scores = jnp.einsum("bhqd,bhkd->bhqk", qh, kh) / math.sqrt(Dk)
    p = jax.nn.softmax(scores, axis=-1)
    o = jnp.einsum("bhqk,bhkd->bhqd", p, vh)
    concat = o.transpose(0, 2, 1, 3).reshape(B, S, D)
    return lin(concat, mha.wo, mha.bo)


if __name__ == "__main__":
    key = jax.random.PRNGKey(0)
    kparam, kq, kk, kv = jax.random.split(key, 4)

    B, S, D, H = 2, 8, 32, 4
    mha = MultiheadAttention(heads=H, d_model=D, key=kparam)

    q = jax.random.normal(kq, (B, S, D), jnp.float32)
    k = jax.random.normal(kk, (B, S, D), jnp.float32)
    v = jax.random.normal(kv, (B, S, D), jnp.float32)

    out = jax.block_until_ready(mha(q, k, v))
    ref = reference_forward(mha, q, k, v)

    assert out.shape == (B, S, D)
    # Tolerance relaxed vs 1e-4: the softmax denominator uses the EUP
    # approximate reciprocal (pl.reciprocal(..., approx=True)).
    assert jnp.allclose(out, ref, atol=1e-2, rtol=1e-2), "mismatch vs reference"

    print("KERNEL_OK")
</pallas_src>

<mosaic_0001>
module attributes {stable_mosaic.version = 11 : i64} {
  func.func @_mha_kernel(%arg0: memref<16x32xf32, #tpu.memory_space<vmem>>, %arg1: memref<16x32xf32, #tpu.memory_space<vmem>>, %arg2: memref<16x32xf32, #tpu.memory_space<vmem>>, %arg3: memref<4x32x32xf32, #tpu.memory_space<vmem>>, %arg4: memref<4x1x32xf32, #tpu.memory_space<vmem>>, %arg5: memref<16x32xf32, #tpu.memory_space<vmem>>) attributes {dimension_semantics = [], scalar_prefetch = 0 : i64, scratch_operands = 0 : i64, tpu.core_type = #tpu.core_type<tc>} {
    %c0 = arith.constant 0 : index
    %c0_0 = arith.constant 0 : index
    %0 = vector.load %arg0[%c0, %c0_0] : memref<16x32xf32, #tpu.memory_space<vmem>>, vector<16x32xf32>
    %c0_1 = arith.constant 0 : index
    %c0_2 = arith.constant 0 : index
    %1 = vector.load %arg1[%c0_1, %c0_2] : memref<16x32xf32, #tpu.memory_space<vmem>>, vector<16x32xf32>
    %c0_3 = arith.constant 0 : index
    %c0_4 = arith.constant 0 : index
    %2 = vector.load %arg2[%c0_3, %c0_4] : memref<16x32xf32, #tpu.memory_space<vmem>>, vector<16x32xf32>
    %c0_5 = arith.constant 0 : index
    %c0_6 = arith.constant 0 : index
    %c0_7 = arith.constant 0 : index
    %3 = vector.load %arg3[%c0_5, %c0_6, %c0_7] : memref<4x32x32xf32, #tpu.memory_space<vmem>>, vector<1x32x32xf32>
    %4 = vector.shape_cast %3 : vector<1x32x32xf32> to vector<32x32xf32>
    %cst = arith.constant dense<0.000000e+00> : vector<16x32xf32>
    %5 = tpu.matmul %0, %4, %cst {dimension_numbers = #tpu.dot_dimension_numbers<[1], [0], [0], [1], [0, 0, 1, 1], [], []>} : vector<16x32xf32>, vector<32x32xf32>, vector<16x32xf32> -> vector<16x32xf32>
    %c0_8 = arith.constant 0 : index
    %c0_9 = arith.constant 0 : index
    %c0_10 = arith.constant 0 : index
    %6 = vector.load %arg4[%c0_8, %c0_9, %c0_10] : memref<4x1x32xf32, #tpu.memory_space<vmem>>, vector<1x1x32xf32>
    %7 = vector.shape_cast %6 : vector<1x1x32xf32> to vector<1x32xf32>
    %8 = vector.broadcast %7 : vector<1x32xf32> to vector<16x32xf32>
    %9 = arith.addf %5, %8 : vector<16x32xf32>
    %c1 = arith.constant 1 : index
    %c0_11 = arith.constant 0 : index
    %c0_12 = arith.constant 0 : index
    %10 = vector.load %arg3[%c1, %c0_11, %c0_12] : memref<4x32x32xf32, #tpu.memory_space<vmem>>, vector<1x32x32xf32>
    %11 = vector.shape_cast %10 : vector<1x32x32xf32> to vector<32x32xf32>
    %cst_13 = arith.constant dense<0.000000e+00> : vector<16x32xf32>
    %12 = tpu.matmul %1, %11, %cst_13 {dimension_numbers = #tpu.dot_dimension_numbers<[1], [0], [0], [1], [0, 0, 1, 1], [], []>} : vector<16x32xf32>, vector<32x32xf32>, vector<16x32xf32> -> vector<16x32xf32>
    %c1_14 = arith.constant 1 : index
    %c0_15 = arith.constant 0 : index
    %c0_16 = arith.constant 0 : index
    %13 = vector.load %arg4[%c1_14, %c0_15, %c0_16] : memref<4x1x32xf32, #tpu.memory_space<vmem>>, vector<1x1x32xf32>
    %14 = vector.shape_cast %13 : vector<1x1x32xf32> to vector<1x32xf32>
    %15 = vector.broadcast %14 : vector<1x32xf32> to vector<16x32xf32>
    %16 = arith.addf %12, %15 : vector<16x32xf32>
    %c2 = arith.constant 2 : index
    %c0_17 = arith.constant 0 : index
    %c0_18 = arith.constant 0 : index
    %17 = vector.load %arg3[%c2, %c0_17, %c0_18] : memref<4x32x32xf32, #tpu.memory_space<vmem>>, vector<1x32x32xf32>
    %18 = vector.shape_cast %17 : vector<1x32x32xf32> to vector<32x32xf32>
    %cst_19 = arith.constant dense<0.000000e+00> : vector<16x32xf32>
    %19 = tpu.matmul %2, %18, %cst_19 {dimension_numbers = #tpu.dot_dimension_numbers<[1], [0], [0], [1], [0, 0, 1, 1], [], []>} : vector<16x32xf32>, vector<32x32xf32>, vector<16x32xf32> -> vector<16x32xf32>
    %c2_20 = arith.constant 2 : index
    %c0_21 = arith.constant 0 : index
    %c0_22 = arith.constant 0 : index
    %20 = vector.load %arg4[%c2_20, %c0_21, %c0_22] : memref<4x1x32xf32, #tpu.memory_space<vmem>>, vector<1x1x32xf32>
    %21 = vector.shape_cast %20 : vector<1x1x32xf32> to vector<1x32xf32>
    %22 = vector.broadcast %21 : vector<1x32xf32> to vector<16x32xf32>
    %23 = arith.addf %19, %22 : vector<16x32xf32>
    %24 = vector.extract_strided_slice %9 {offsets = [0, 0], sizes = [8, 8], strides = [1, 1]} : vector<16x32xf32> to vector<8x8xf32>
    %25 = vector.extract_strided_slice %16 {offsets = [0, 0], sizes = [8, 8], strides = [1, 1]} : vector<16x32xf32> to vector<8x8xf32>
    %26 = vector.extract_strided_slice %23 {offsets = [0, 0], sizes = [8, 8], strides = [1, 1]} : vector<16x32xf32> to vector<8x8xf32>
    %cst_23 = arith.constant dense<0.000000e+00> : vector<8x8xf32>
    %27 = tpu.matmul %24, %25, %cst_23 {dimension_numbers = #tpu.dot_dimension_numbers<[1], [1], [0], [0], [0, 0, 1, 0], [], []>} : vector<8x8xf32>, vector<8x8xf32>, vector<8x8xf32> -> vector<8x8xf32>
    %cst_24 = arith.constant dense<0xFF800000> : vector<8xf32>
    %28 = vector.multi_reduction <maximumf>, %27, %cst_24 [1] : vector<8x8xf32> to vector<8xf32>
    %29 = vector.shape_cast %28 : vector<8xf32> to vector<8x1xf32>
    %30 = vector.broadcast %29 : vector<8x1xf32> to vector<8x8xf32>
    %31 = arith.subf %27, %30 : vector<8x8xf32>
    %32 = math.exp %31 : vector<8x8xf32>
    %cst_25 = arith.constant dense<0.000000e+00> : vector<8xf32>
    %33 = vector.multi_reduction <add>, %32, %cst_25 [1] : vector<8x8xf32> to vector<8xf32>
    %34 = vector.shape_cast %33 : vector<8xf32> to vector<8x1xf32>
    %35 = tpu.reciprocal %34 {approx = true} : vector<8x1xf32> -> vector<8x1xf32>
    %36 = vector.broadcast %35 : vector<8x1xf32> to vector<8x8xf32>
    %37 = arith.mulf %32, %36 : vector<8x8xf32>
    %cst_26 = arith.constant dense<0.000000e+00> : vector<8x8xf32>
    %38 = tpu.matmul %37, %26, %cst_26 {dimension_numbers = #tpu.dot_dimension_numbers<[1], [0], [0], [1], [0, 0, 1, 1], [], []>} : vector<8x8xf32>, vector<8x8xf32>, vector<8x8xf32> -> vector<8x8xf32>
    %39 = vector.extract_strided_slice %9 {offsets = [0, 8], sizes = [8, 8], strides = [1, 1]} : vector<16x32xf32> to vector<8x8xf32>
    %40 = vector.extract_strided_slice %16 {offsets = [0, 8], sizes = [8, 8], strides = [1, 1]} : vector<16x32xf32> to vector<8x8xf32>
    %41 = vector.extract_strided_slice %23 {offsets = [0, 8], sizes = [8, 8], strides = [1, 1]} : vector<16x32xf32> to vector<8x8xf32>
    %cst_27 = arith.constant dense<0.000000e+00> : vector<8x8xf32>
    %42 = tpu.matmul %39, %40, %cst_27 {dimension_numbers = #tpu.dot_dimension_numbers<[1], [1], [0], [0], [0, 0, 1, 0], [], []>} : vector<8x8xf32>, vector<8x8xf32>, vector<8x8xf32> -> vector<8x8xf32>
    %cst_28 = arith.constant dense<0xFF800000> : vector<8xf32>
    %43 = vector.multi_reduction <maximumf>, %42, %cst_28 [1] : vector<8x8xf32> to vector<8xf32>
    %44 = vector.shape_cast %43 : vector<8xf32> to vector<8x1xf32>
    %45 = vector.broadcast %44 : vector<8x1xf32> to vector<8x8xf32>
    %46 = arith.subf %42, %45 : vector<8x8xf32>
    %47 = math.exp %46 : vector<8x8xf32>
    %cst_29 = arith.constant dense<0.000000e+00> : vector<8xf32>
    %48 = vector.multi_reduction <add>, %47, %cst_29 [1] : vector<8x8xf32> to vector<8xf32>
    %49 = vector.shape_cast %48 : vector<8xf32> to vector<8x1xf32>
    %50 = tpu.reciprocal %49 {approx = true} : vector<8x1xf32> -> vector<8x1xf32>
    %51 = vector.broadcast %50 : vector<8x1xf32> to vector<8x8xf32>
    %52 = arith.mulf %47, %51 : vector<8x8xf32>
    %cst_30 = arith.constant dense<0.000000e+00> : vector<8x8xf32>
    %53 = tpu.matmul %52, %41, %cst_30 {dimension_numbers = #tpu.dot_dimension_numbers<[1], [0], [0], [1], [0, 0, 1, 1], [], []>} : vector<8x8xf32>, vector<8x8xf32>, vector<8x8xf32> -> vector<8x8xf32>
    %54 = vector.extract_strided_slice %9 {offsets = [0, 16], sizes = [8, 8], strides = [1, 1]} : vector<16x32xf32> to vector<8x8xf32>
    %55 = vector.extract_strided_slice %16 {offsets = [0, 16], sizes = [8, 8], strides = [1, 1]} : vector<16x32xf32> to vector<8x8xf32>
    %56 = vector.extract_strided_slice %23 {offsets = [0, 16], sizes = [8, 8], strides = [1, 1]} : vector<16x32xf32> to vector<8x8xf32>
    %cst_31 = arith.constant dense<0.000000e+00> : vector<8x8xf32>
    %57 = tpu.matmul %54, %55, %cst_31 {dimension_numbers = #tpu.dot_dimension_numbers<[1], [1], [0], [0], [0, 0, 1, 0], [], []>} : vector<8x8xf32>, vector<8x8xf32>, vector<8x8xf32> -> vector<8x8xf32>
    %cst_32 = arith.constant dense<0xFF800000> : vector<8xf32>
    %58 = vector.multi_reduction <maximumf>, %57, %cst_32 [1] : vector<8x8xf32> to vector<8xf32>
    %59 = vector.shape_cast %58 : vector<8xf32> to vector<8x1xf32>
    %60 = vector.broadcast %59 : vector<8x1xf32> to vector<8x8xf32>
    %61 = arith.subf %57, %60 : vector<8x8xf32>
    %62 = math.exp %61 : vector<8x8xf32>
    %cst_33 = arith.constant dense<0.000000e+00> : vector<8xf32>
    %63 = vector.multi_reduction <add>, %62, %cst_33 [1] : vector<8x8xf32> to vector<8xf32>
    %64 = vector.shape_cast %63 : vector<8xf32> to vector<8x1xf32>
    %65 = tpu.reciprocal %64 {approx = true} : vector<8x1xf32> -> vector<8x1xf32>
    %66 = vector.broadcast %65 : vector<8x1xf32> to vector<8x8xf32>
    %67 = arith.mulf %62, %66 : vector<8x8xf32>
    %cst_34 = arith.constant dense<0.000000e+00> : vector<8x8xf32>
    %68 = tpu.matmul %67, %56, %cst_34 {dimension_numbers = #tpu.dot_dimension_numbers<[1], [0], [0], [1], [0, 0, 1, 1], [], []>} : vector<8x8xf32>, vector<8x8xf32>, vector<8x8xf32> -> vector<8x8xf32>
    %69 = vector.extract_strided_slice %9 {offsets = [0, 24], sizes = [8, 8], strides = [1, 1]} : vector<16x32xf32> to vector<8x8xf32>
    %70 = vector.extract_strided_slice %16 {offsets = [0, 24], sizes = [8, 8], strides = [1, 1]} : vector<16x32xf32> to vector<8x8xf32>
    %71 = vector.extract_strided_slice %23 {offsets = [0, 24], sizes = [8, 8], strides = [1, 1]} : vector<16x32xf32> to vector<8x8xf32>
    %cst_35 = arith.constant dense<0.000000e+00> : vector<8x8xf32>
    %72 = tpu.matmul %69, %70, %cst_35 {dimension_numbers = #tpu.dot_dimension_numbers<[1], [1], [0], [0], [0, 0, 1, 0], [], []>} : vector<8x8xf32>, vector<8x8xf32>, vector<8x8xf32> -> vector<8x8xf32>
    %cst_36 = arith.constant dense<0xFF800000> : vector<8xf32>
    %73 = vector.multi_reduction <maximumf>, %72, %cst_36 [1] : vector<8x8xf32> to vector<8xf32>
    %74 = vector.shape_cast %73 : vector<8xf32> to vector<8x1xf32>
    %75 = vector.broadcast %74 : vector<8x1xf32> to vector<8x8xf32>
    %76 = arith.subf %72, %75 : vector<8x8xf32>
    %77 = math.exp %76 : vector<8x8xf32>
    %cst_37 = arith.constant dense<0.000000e+00> : vector<8xf32>
    %78 = vector.multi_reduction <add>, %77, %cst_37 [1] : vector<8x8xf32> to vector<8xf32>
    %79 = vector.shape_cast %78 : vector<8xf32> to vector<8x1xf32>
    %80 = tpu.reciprocal %79 {approx = true} : vector<8x1xf32> -> vector<8x1xf32>
    %81 = vector.broadcast %80 : vector<8x1xf32> to vector<8x8xf32>
    %82 = arith.mulf %77, %81 : vector<8x8xf32>
    %cst_38 = arith.constant dense<0.000000e+00> : vector<8x8xf32>
    %83 = tpu.matmul %82, %71, %cst_38 {dimension_numbers = #tpu.dot_dimension_numbers<[1], [0], [0], [1], [0, 0, 1, 1], [], []>} : vector<8x8xf32>, vector<8x8xf32>, vector<8x8xf32> -> vector<8x8xf32>
    %84 = tpu.concatenate %38, %53, %68, %83 in 1 : vector<8x8xf32>, vector<8x8xf32>, vector<8x8xf32>, vector<8x8xf32> -> vector<8x32xf32>
    %85 = vector.extract_strided_slice %9 {offsets = [8, 0], sizes = [8, 8], strides = [1, 1]} : vector<16x32xf32> to vector<8x8xf32>
    %86 = vector.extract_strided_slice %16 {offsets = [8, 0], sizes = [8, 8], strides = [1, 1]} : vector<16x32xf32> to vector<8x8xf32>
    %87 = vector.extract_strided_slice %23 {offsets = [8, 0], sizes = [8, 8], strides = [1, 1]} : vector<16x32xf32> to vector<8x8xf32>
    %cst_39 = arith.constant dense<0.000000e+00> : vector<8x8xf32>
    %88 = tpu.matmul %85, %86, %cst_39 {dimension_numbers = #tpu.dot_dimension_numbers<[1], [1], [0], [0], [0, 0, 1, 0], [], []>} : vector<8x8xf32>, vector<8x8xf32>, vector<8x8xf32> -> vector<8x8xf32>
    %cst_40 = arith.constant dense<0xFF800000> : vector<8xf32>
    %89 = vector.multi_reduction <maximumf>, %88, %cst_40 [1] : vector<8x8xf32> to vector<8xf32>
    %90 = vector.shape_cast %89 : vector<8xf32> to vector<8x1xf32>
    %91 = vector.broadcast %90 : vector<8x1xf32> to vector<8x8xf32>
    %92 = arith.subf %88, %91 : vector<8x8xf32>
    %93 = math.exp %92 : vector<8x8xf32>
    %cst_41 = arith.constant dense<0.000000e+00> : vector<8xf32>
    %94 = vector.multi_reduction <add>, %93, %cst_41 [1] : vector<8x8xf32> to vector<8xf32>
    %95 = vector.shape_cast %94 : vector<8xf32> to vector<8x1xf32>
    %96 = tpu.reciprocal %95 {approx = true} : vector<8x1xf32> -> vector<8x1xf32>
    %97 = vector.broadcast %96 : vector<8x1xf32> to vector<8x8xf32>
    %98 = arith.mulf %93, %97 : vector<8x8xf32>
    %cst_42 = arith.constant dense<0.000000e+00> : vector<8x8xf32>
    %99 = tpu.matmul %98, %87, %cst_42 {dimension_numbers = #tpu.dot_dimension_numbers<[1], [0], [0], [1], [0, 0, 1, 1], [], []>} : vector<8x8xf32>, vector<8x8xf32>, vector<8x8xf32> -> vector<8x8xf32>
    %100 = vector.extract_strided_slice %9 {offsets = [8, 8], sizes = [8, 8], strides = [1, 1]} : vector<16x32xf32> to vector<8x8xf32>
    %101 = vector.extract_strided_slice %16 {offsets = [8, 8], sizes = [8, 8], strides = [1, 1]} : vector<16x32xf32> to vector<8x8xf32>
    %102 = vector.extract_strided_slice %23 {offsets = [8, 8], sizes = [8, 8], strides = [1, 1]} : vector<16x32xf32> to vector<8x8xf32>
    %cst_43 = arith.constant dense<0.000000e+00> : vector<8x8xf32>
    %103 = tpu.matmul %100, %101, %cst_43 {dimension_numbers = #tpu.dot_dimension_numbers<[1], [1], [0], [0], [0, 0, 1, 0], [], []>} : vector<8x8xf32>, vector<8x8xf32>, vector<8x8xf32> -> vector<8x8xf32>
    %cst_44 = arith.constant dense<0xFF800000> : vector<8xf32>
    %104 = vector.multi_reduction <maximumf>, %103, %cst_44 [1] : vector<8x8xf32> to vector<8xf32>
    %105 = vector.shape_cast %104 : vector<8xf32> to vector<8x1xf32>
    %106 = vector.broadcast %105 : vector<8x1xf32> to vector<8x8xf32>
    %107 = arith.subf %103, %106 : vector<8x8xf32>
    %108 = math.exp %107 : vector<8x8xf32>
    %cst_45 = arith.constant dense<0.000000e+00> : vector<8xf32>
    %109 = vector.multi_reduction <add>, %108, %cst_45 [1] : vector<8x8xf32> to vector<8xf32>
    %110 = vector.shape_cast %109 : vector<8xf32> to vector<8x1xf32>
    %111 = tpu.reciprocal %110 {approx = true} : vector<8x1xf32> -> vector<8x1xf32>
    %112 = vector.broadcast %111 : vector<8x1xf32> to vector<8x8xf32>
    %113 = arith.mulf %108, %112 : vector<8x8xf32>
    %cst_46 = arith.constant dense<0.000000e+00> : vector<8x8xf32>
    %114 = tpu.matmul %113, %102, %cst_46 {dimension_numbers = #tpu.dot_dimension_numbers<[1], [0], [0], [1], [0, 0, 1, 1], [], []>} : vector<8x8xf32>, vector<8x8xf32>, vector<8x8xf32> -> vector<8x8xf32>
    %115 = vector.extract_strided_slice %9 {offsets = [8, 16], sizes = [8, 8], strides = [1, 1]} : vector<16x32xf32> to vector<8x8xf32>
    %116 = vector.extract_strided_slice %16 {offsets = [8, 16], sizes = [8, 8], strides = [1, 1]} : vector<16x32xf32> to vector<8x8xf32>
    %117 = vector.extract_strided_slice %23 {offsets = [8, 16], sizes = [8, 8], strides = [1, 1]} : vector<16x32xf32> to vector<8x8xf32>
    %cst_47 = arith.constant dense<0.000000e+00> : vector<8x8xf32>
    %118 = tpu.matmul %115, %116, %cst_47 {dimension_numbers = #tpu.dot_dimension_numbers<[1], [1], [0], [0], [0, 0, 1, 0], [], []>} : vector<8x8xf32>, vector<8x8xf32>, vector<8x8xf32> -> vector<8x8xf32>
    %cst_48 = arith.constant dense<0xFF800000> : vector<8xf32>
    %119 = vector.multi_reduction <maximumf>, %118, %cst_48 [1] : vector<8x8xf32> to vector<8xf32>
    %120 = vector.shape_cast %119 : vector<8xf32> to vector<8x1xf32>
    %121 = vector.broadcast %120 : vector<8x1xf32> to vector<8x8xf32>
    %122 = arith.subf %118, %121 : vector<8x8xf32>
    %123 = math.exp %122 : vector<8x8xf32>
    %cst_49 = arith.constant dense<0.000000e+00> : vector<8xf32>
    %124 = vector.multi_reduction <add>, %123, %cst_49 [1] : vector<8x8xf32> to vector<8xf32>
    %125 = vector.shape_cast %124 : vector<8xf32> to vector<8x1xf32>
    %126 = tpu.reciprocal %125 {approx = true} : vector<8x1xf32> -> vector<8x1xf32>
    %127 = vector.broadcast %126 : vector<8x1xf32> to vector<8x8xf32>
    %128 = arith.mulf %123, %127 : vector<8x8xf32>
    %cst_50 = arith.constant dense<0.000000e+00> : vector<8x8xf32>
    %129 = tpu.matmul %128, %117, %cst_50 {dimension_numbers = #tpu.dot_dimension_numbers<[1], [0], [0], [1], [0, 0, 1, 1], [], []>} : vector<8x8xf32>, vector<8x8xf32>, vector<8x8xf32> -> vector<8x8xf32>
    %130 = vector.extract_strided_slice %9 {offsets = [8, 24], sizes = [8, 8], strides = [1, 1]} : vector<16x32xf32> to vector<8x8xf32>
    %131 = vector.extract_strided_slice %16 {offsets = [8, 24], sizes = [8, 8], strides = [1, 1]} : vector<16x32xf32> to vector<8x8xf32>
    %132 = vector.extract_strided_slice %23 {offsets = [8, 24], sizes = [8, 8], strides = [1, 1]} : vector<16x32xf32> to vector<8x8xf32>
    %cst_51 = arith.constant dense<0.000000e+00> : vector<8x8xf32>
    %133 = tpu.matmul %130, %131, %cst_51 {dimension_numbers = #tpu.dot_dimension_numbers<[1], [1], [0], [0], [0, 0, 1, 0], [], []>} : vector<8x8xf32>, vector<8x8xf32>, vector<8x8xf32> -> vector<8x8xf32>
    %cst_52 = arith.constant dense<0xFF800000> : vector<8xf32>
    %134 = vector.multi_reduction <maximumf>, %133, %cst_52 [1] : vector<8x8xf32> to vector<8xf32>
    %135 = vector.shape_cast %134 : vector<8xf32> to vector<8x1xf32>
    %136 = vector.broadcast %135 : vector<8x1xf32> to vector<8x8xf32>
    %137 = arith.subf %133, %136 : vector<8x8xf32>
    %138 = math.exp %137 : vector<8x8xf32>
    %cst_53 = arith.constant dense<0.000000e+00> : vector<8xf32>
    %139 = vector.multi_reduction <add>, %138, %cst_53 [1] : vector<8x8xf32> to vector<8xf32>
    %140 = vector.shape_cast %139 : vector<8xf32> to vector<8x1xf32>
    %141 = tpu.reciprocal %140 {approx = true} : vector<8x1xf32> -> vector<8x1xf32>
    %142 = vector.broadcast %141 : vector<8x1xf32> to vector<8x8xf32>
    %143 = arith.mulf %138, %142 : vector<8x8xf32>
    %cst_54 = arith.constant dense<0.000000e+00> : vector<8x8xf32>
    %144 = tpu.matmul %143, %132, %cst_54 {dimension_numbers = #tpu.dot_dimension_numbers<[1], [0], [0], [1], [0, 0, 1, 1], [], []>} : vector<8x8xf32>, vector<8x8xf32>, vector<8x8xf32> -> vector<8x8xf32>
    %145 = tpu.concatenate %99, %114, %129, %144 in 1 : vector<8x8xf32>, vector<8x8xf32>, vector<8x8xf32>, vector<8x8xf32> -> vector<8x32xf32>
    %146 = tpu.concatenate %84, %145 in 0 : vector<8x32xf32>, vector<8x32xf32> -> vector<16x32xf32>
    %c3 = arith.constant 3 : index
    %c0_55 = arith.constant 0 : index
    %c0_56 = arith.constant 0 : index
    %147 = vector.load %arg3[%c3, %c0_55, %c0_56] : memref<4x32x32xf32, #tpu.memory_space<vmem>>, vector<1x32x32xf32>
    %148 = vector.shape_cast %147 : vector<1x32x32xf32> to vector<32x32xf32>
    %cst_57 = arith.constant dense<0.000000e+00> : vector<16x32xf32>
    %149 = tpu.matmul %146, %148, %cst_57 {dimension_numbers = #tpu.dot_dimension_numbers<[1], [0], [0], [1], [0, 0, 1, 1], [], []>} : vector<16x32xf32>, vector<32x32xf32>, vector<16x32xf32> -> vector<16x32xf32>
    %c3_58 = arith.constant 3 : index
    %c0_59 = arith.constant 0 : index
    %c0_60 = arith.constant 0 : index
    %150 = vector.load %arg4[%c3_58, %c0_59, %c0_60] : memref<4x1x32xf32, #tpu.memory_space<vmem>>, vector<1x1x32xf32>
    %151 = vector.shape_cast %150 : vector<1x1x32xf32> to vector<1x32xf32>
    %152 = vector.broadcast %151 : vector<1x32xf32> to vector<16x32xf32>
    %153 = arith.addf %149, %152 : vector<16x32xf32>
    %c0_61 = arith.constant 0 : index
    %c0_62 = arith.constant 0 : index
    %154 = vector.load %arg5[%c0_61, %c0_62] : memref<16x32xf32, #tpu.memory_space<vmem>>, vector<16x32xf32>
    tpu.vector_store %arg5[%c0_61, %c0_62], %153 {strides = array<i32>} : memref<16x32xf32, #tpu.memory_space<vmem>>, vector<16x32xf32>,
    return
  }
}

</mosaic_0001>

<llo_original>
// kernel: tpu_custom_call.1
$region0: #{tpu_custom_call.1}
  #allocation0 [shape = 'u32[]', space=smem, size = 0x4, offset = 0x4, fixed_abs, tag = 'smem constant byte address 0x4 - core index']
  #allocation1 [shape = 'u32[144,128]{1,0:T(1,128)}', space=vmem, size = 0x12000, scoped, tag = 'internal scratch']
  %s0 = inlined_call_operand.hbm [shape: f32[16,32], index: 0, kind: input, shape index: {}]
  %s1 = inlined_call_operand.hbm [shape: f32[16,32], index: 1, kind: input, shape index: {}]
  %s2 = inlined_call_operand.hbm [shape: f32[16,32], index: 2, kind: input, shape index: {}]
  %s3 = inlined_call_operand.hbm [shape: f32[4,32,32], index: 3, kind: input, shape index: {}]
  %s4 = inlined_call_operand.vmem [shape: f32[4,1,32], index: 4, kind: input, shape index: {}]
  %s5 = inlined_call_operand.hbm [shape: f32[16,32], index: 5, kind: output, shape index: {}]
  %s6 = sld [smem:[#allocation0]]
  $region46: #{tpu_custom_call.1} parent=0
    _
  %s8 = ssub.s32 1, %s6
  %s9 = scalar_select 0, %s8, %s6
  $region1: #{tpu_custom_call.1} parent=0
    #allocation2 [shape = 'u8[8192]{0}', space=vmem, size = 0x2000, scoped, tag = 'input window, operand 0, single buffered']
    #allocation3 [shape = 's32[1]{0}', space=sflag, size = 0x4, scoped, tag = 'scoped memory for tpu_custom_call.1']
    #allocation4 [shape = 's32[1]{0}', space=sflag, size = 0x4, scoped, tag = 'scoped memory for tpu_custom_call.1']
    #allocation5 [shape = 'u8[8192]{0}', space=vmem, size = 0x2000, scoped, tag = 'input window, operand 1, single buffered']
    #allocation6 [shape = 's32[1]{0}', space=sflag, size = 0x4, scoped, tag = 'scoped memory for tpu_custom_call.1']
    #allocation7 [shape = 'u8[8192]{0}', space=vmem, size = 0x2000, scoped, tag = 'input window, operand 2, single buffered']
    #allocation8 [shape = 'u8[65536]{0}', space=vmem, size = 0x10000, scoped, tag = 'input window, operand 3, single buffered']
    #allocation9 [shape = 's32[1]{0}', space=sflag, size = 0x4, scoped, tag = 'scoped memory for tpu_custom_call.1']
    #allocation10 [shape = 'u8[8192]{0}', space=vmem, size = 0x2000, scoped, tag = 'output window, operand 0, single buffered']
    %10 = vsyncpa [#allocation3], 0
    %11 = vsyncpa [#allocation6], 0
    %12 = vsyncpa [#allocation9], 0
    %13 = vsyncpa [#allocation4], 0
    // Predicated region
    $region2: #{tpu_custom_call.1} parent=1 // pred_check
      _
    $region3: #{tpu_custom_call.1} parent=1 // pred_check_branch
      %15 = sbr.rel (0) target = $region5
    $region4: #{tpu_custom_call.1} parent=1 // pred_region
      %s17 = ssub.s32 256, 256
      %18 = vsyncadd [#allocation3], %s17
      %s19 = sshll.u32 [#allocation2], 4
      %s20 = int_to_ptr.vmem [resolvable:$true] %s19
      %25 = dma.hbm_to_vmem [thread:$0]  %s0, 256, %s20, [#allocation3], 128, 128, 8
    $region5: #{tpu_custom_call.1} parent=1 // pred_fallthru
      _
    // Predicated region
    $region6: #{tpu_custom_call.1} parent=1 // pred_check
      _
    $region7: #{tpu_custom_call.1} parent=1 // pred_check_branch
      %27 = sbr.rel (0) target = $region9
    $region8: #{tpu_custom_call.1} parent=1 // pred_region
      %s29 = ssub.s32 256, 256
      %30 = vsyncadd [#allocation6], %s29
      %s31 = sshll.u32 [#allocation5], 4
      %s32 = int_to_ptr.vmem [resolvable:$true] %s31
      %37 = dma.hbm_to_vmem [thread:$0]  %s1, 256, %s32, [#allocation6], 128, 128, 8
    $region9: #{tpu_custom_call.1} parent=1 // pred_fallthru
      _
    // Predicated region
    $region10: #{tpu_custom_call.1} parent=1 // pred_check
      _
    $region11: #{tpu_custom_call.1} parent=1 // pred_check_branch
      %39 = sbr.rel (0) target = $region13
    $region12: #{tpu_custom_call.1} parent=1 // pred_region
      %s41 = ssub.s32 256, 256
      %42 = vsyncadd [#allocation6], %s41
      %s43 = sshll.u32 [#allocation7], 4
      %s44 = int_to_ptr.vmem [resolvable:$true] %s43
      %49 = dma.hbm_to_vmem [thread:$0]  %s2, 256, %s44, [#allocation6], 128, 128, 8
    $region13: #{tpu_custom_call.1} parent=1 // pred_fallthru
      _
    // Predicated region
    $region14: #{tpu_custom_call.1} parent=1 // pred_check
      _
    $region15: #{tpu_custom_call.1} parent=1 // pred_check_branch
      %51 = sbr.rel (0) target = $region17
    $region16: #{tpu_custom_call.1} parent=1 // pred_region
      %s53 = ssub.s32 2048, 2048
      %54 = vsyncadd [#allocation9], %s53
      %s55 = sshll.u32 [#allocation8], 4
      %s56 = int_to_ptr.vmem [resolvable:$true] %s55
      %61 = dma.hbm_to_vmem [thread:$0]  %s3, 2048, %s56, [#allocation9], 128, 128, 8
    $region17: #{tpu_custom_call.1} parent=1 // pred_fallthru
      _
    // Predicated region
    $region18: #{tpu_custom_call.1} parent=1 // pred_check
      _
    $region19: #{tpu_custom_call.1} parent=1 // pred_check_branch
      %63 = sbr.rel (0) target = $region21
    $region20: #{tpu_custom_call.1} parent=1 // pred_region
      _
    $region21: #{tpu_custom_call.1} parent=1 // pred_fallthru
      _
    // Predicated region
    $region22: #{tpu_custom_call.1} parent=1 // pred_check
      _
    $region23: #{tpu_custom_call.1} parent=1 // pred_check_branch
      %65 = sbr.rel (0) target = $region25
    $region24: #{tpu_custom_call.1} parent=1 // pred_region
      %66 = dma.done [#allocation3], 256
    $region25: #{tpu_custom_call.1} parent=1 // pred_fallthru
      _
    // Predicated region
    $region26: #{tpu_custom_call.1} parent=1 // pred_check
      _
    $region27: #{tpu_custom_call.1} parent=1 // pred_check_branch
      %68 = sbr.rel (0) target = $region29
    $region28: #{tpu_custom_call.1} parent=1 // pred_region
      %69 = dma.done [#allocation6], 256
    $region29: #{tpu_custom_call.1} parent=1 // pred_fallthru
      _
    // Predicated region
    $region30: #{tpu_custom_call.1} parent=1 // pred_check
      _
    $region31: #{tpu_custom_call.1} parent=1 // pred_check_branch
      %71 = sbr.rel (0) target = $region33
    $region32: #{tpu_custom_call.1} parent=1 // pred_region
      %72 = dma.done [#allocation6], 256
    $region33: #{tpu_custom_call.1} parent=1 // pred_fallthru
      _
    // Predicated region
    $region34: #{tpu_custom_call.1} parent=1 // pred_check
      _
    $region35: #{tpu_custom_call.1} parent=1 // pred_check_branch
      %74 = sbr.rel (0) target = $region37
    $region36: #{tpu_custom_call.1} parent=1 // pred_region
      %75 = dma.done [#allocation9], 2048
    $region37: #{tpu_custom_call.1} parent=1 // pred_fallthru
      _
    %v76 = vld [vmem:[#allocation2] sm:$0xff]
    %v77 = vld [vmem:[#allocation2 + $0x8] sm:$0xff]
    %v78 = vld [vmem:[#allocation5] sm:$0xff]
    %v79 = vld [vmem:[#allocation5 + $0x8] sm:$0xff]
    %v80 = vld [vmem:[#allocation7] sm:$0xff]
    %v81 = vld [vmem:[#allocation7 + $0x8] sm:$0xff]
    %v82 = vld [vmem:[#allocation8] sm:$0xff]
    %v83 = vld [vmem:[#allocation8 + $0x8] sm:$0xff]
    %v84 = vld [vmem:[#allocation8 + $0x10] sm:$0xff]
    %v85 = vld [vmem:[#allocation8 + $0x18] sm:$0xff]
    %v86 = vld [vmem:[%s4] sm:$0x1]
    %v88 = vlaneseq
    %v89 = vshrl.u32 %v88, 7
    %v90 = vsub.s32 0, %v89
    %v91 = vrot.slane %v86, %v90
    %vm93 = vcmask 261120
    %v95 = vsel %vm93, %v76, 0
    %v98 = vsel %vm93, %v77, 0
    %100 = vmatprep.subr.mxu0 0.0
    %101 = vmatpush1.msra.mxu0 0.0
    %102 = vmatprep.subr.mxu0 0.0
    %103 = vmatpush1.msra.mxu0 0.0
    %104 = vmatprep.subr.mxu0 0.0
    %105 = vmatpush1.msra.mxu0 0.0
    %106 = vmatprep.subr.mxu0 0.0
    %107 = vmatpush1.msra.mxu0 0.0
    %108 = vmatprep.subr.mxu0 0.0
    %109 = vmatpush1.msra.mxu0 0.0
    %110 = vmatprep.subr.mxu0 0.0
    %111 = vmatpush1.msra.mxu0 0.0
    %112 = vmatprep.subr.mxu0 0.0
    %113 = vmatpush1.msra.mxu0 0.0
    %114 = vmatprep.subr.mxu0 0.0
    %115 = vmatpush1.msra.mxu0 0.0
    %116 = vmatprep.subr.mxu0 0.0
    %117 = vmatpush1.msra.mxu0 0.0
    %118 = vmatprep.subr.mxu0 0.0
    %119 = vmatpush1.msra.mxu0 0.0
    %120 = vmatprep.subr.mxu0 0.0
    %121 = vmatpush1.msra.mxu0 0.0
    %122 = vmatprep.subr.mxu0 0.0
    %123 = vmatpush1.msra.mxu0 0.0
    %124 = vmatprep.subr.mxu0 0.0
    %125 = vmatpush1.msra.mxu0 %v85
    %126 = vmatprep.subr.mxu0 0.0
    %127 = vmatpush1.msra.mxu0 %v84
    %128 = vmatprep.subr.mxu0 0.0
    %129 = vmatpush1.msra.mxu0 %v83
    %130 = vmatprep.subr.mxu0 0.0
    %131 = vmatpush1.msra.mxu0 %v82
    %132 = vmatprep.subr.mxu0 0.0
    %133 = vmatpush2.msra.mxu0 0.0
    %134 = vmatprep.subr.mxu0 0.0
    %135 = vmatpush2.msra.mxu0 0.0
    %136 = vmatprep.subr.mxu0 0.0
    %137 = vmatpush2.msra.mxu0 0.0
    %138 = vmatprep.subr.mxu0 0.0
    %139 = vmatpush2.msra.mxu0 0.0
    %140 = vmatprep.subr.mxu0 0.0
    %141 = vmatpush2.msra.mxu0 0.0
    %142 = vmatprep.subr.mxu0 0.0
    %143 = vmatpush2.msra.mxu0 0.0
    %144 = vmatprep.subr.mxu0 0.0
    %145 = vmatpush2.msra.mxu0 0.0
    %146 = vmatprep.subr.mxu0 0.0
    %147 = vmatpush2.msra.mxu0 0.0
    %148 = vmatprep.subr.mxu0 0.0
    %149 = vmatpush2.msra.mxu0 0.0
    %150 = vmatprep.subr.mxu0 0.0
    %151 = vmatpush2.msra.mxu0 0.0
    %152 = vmatprep.subr.mxu0 0.0
    %153 = vmatpush2.msra.mxu0 0.0
    %154 = vmatprep.subr.mxu0 0.0
    %155 = vmatpush2.msra.mxu0 0.0
    %156 = vmatprep.subr.mxu0 0.0
    %157 = vmatpush2.msra.mxu0 0.0
    %158 = vmatprep.subr.mxu0 0.0
    %159 = vmatpush2.msra.mxu0 0.0
    %160 = vmatprep.subr.mxu0 0.0
    %161 = vmatpush2.msra.mxu0 0.0
    %162 = vmatprep.subr.mxu0 0.0
    %163 = vmatpush2.msra.mxu0 0.0
    %164 = vmatprep.mubr.f32.mxu0 0.0
    %165 = vmatmul.mubr.f32.gmra.mxu0 %v95
    %v166 = vpop.f32.mrf.mxu0
    %v167 = vadd.f32 %v91, %v166
    %v168 = vpop.f32.mrf.mxu0
    %169 = vmatprep.mubr.f32.mxu0 0.0
    %170 = vmatmul.mubr.f32.gmra.mxu0 %v98
    %v171 = vpop.f32.mrf.mxu0
    %v172 = vadd.f32 %v91, %v171
    %v173 = vpop.f32.mrf.mxu0
    %174 = vdwg.mxu0
    %s175 = scalar_lea.vmem [#allocation8], 32
    %v176 = vld [vmem:[%s175] sm:$0xff]
    %v177 = vld [vmem:[%s175 + $0x8] sm:$0xff]
    %v178 = vld [vmem:[%s175 + $0x10] sm:$0xff]
    %v179 = vld [vmem:[%s175 + $0x18] sm:$0xff]
    %s180 = scalar_lea.vmem %s4, 1
    %v181 = vld [vmem:[%s180] sm:$0x1]
    %v183 = vlaneseq
    %v184 = vshrl.u32 %v183, 7
    %v185 = vsub.s32 0, %v184
    %v186 = vrot.slane %v181, %v185
    %v189 = vsel %vm93, %v78, 0
    %v192 = vsel %vm93, %v79, 0
    %194 = vmatprep.subr.mxu0 0.0
    %195 = vmatpush1.msra.mxu0 0.0
    %196 = vmatprep.subr.mxu0 0.0
    %197 = vmatpush1.msra.mxu0 0.0
    %198 = vmatprep.subr.mxu0 0.0
    %199 = vmatpush1.msra.mxu0 0.0
    %200 = vmatprep.subr.mxu0 0.0
    %201 = vmatpush1.msra.mxu0 0.0
    %202 = vmatprep.subr.mxu0 0.0
    %203 = vmatpush1.msra.mxu0 0.0
    %204 = vmatprep.subr.mxu0 0.0
    %205 = vmatpush1.msra.mxu0 0.0
    %206 = vmatprep.subr.mxu0 0.0
    %207 = vmatpush1.msra.mxu0 0.0
    %208 = vmatprep.subr.mxu0 0.0
    %209 = vmatpush1.msra.mxu0 0.0
    %210 = vmatprep.subr.mxu0 0.0
    %211 = vmatpush1.msra.mxu0 0.0
    %212 = vmatprep.subr.mxu0 0.0
    %213 = vmatpush1.msra.mxu0 0.0
    %214 = vmatprep.subr.mxu0 0.0
    %215 = vmatpush1.msra.mxu0 0.0
    %216 = vmatprep.subr.mxu0 0.0
    %217 = vmatpush1.msra.mxu0 0.0
    %218 = vmatprep.subr.mxu0 0.0
    %219 = vmatpush1.msra.mxu0 %v179
    %220 = vmatprep.subr.mxu0 0.0
    %221 = vmatpush1.msra.mxu0 %v178
    %222 = vmatprep.subr.mxu0 0.0
    %223 = vmatpush1.msra.mxu0 %v177
    %224 = vmatprep.subr.mxu0 0.0
    %225 = vmatpush1.msra.mxu0 %v176
    %226 = vmatprep.subr.mxu0 0.0
    %227 = vmatpush2.msra.mxu0 0.0
    %228 = vmatprep.subr.mxu0 0.0
    %229 = vmatpush2.msra.mxu0 0.0
    %230 = vmatprep.subr.mxu0 0.0
    %231 = vmatpush2.msra.mxu0 0.0
    %232 = vmatprep.subr.mxu0 0.0
    %233 = vmatpush2.msra.mxu0 0.0
    %234 = vmatprep.subr.mxu0 0.0
    %235 = vmatpush2.msra.mxu0 0.0
    %236 = vmatprep.subr.mxu0 0.0
    %237 = vmatpush2.msra.mxu0 0.0
    %238 = vmatprep.subr.mxu0 0.0
    %239 = vmatpush2.msra.mxu0 0.0
    %240 = vmatprep.subr.mxu0 0.0
    %241 = vmatpush2.msra.mxu0 0.0
    %242 = vmatprep.subr.mxu0 0.0
    %243 = vmatpush2.msra.mxu0 0.0
    %244 = vmatprep.subr.mxu0 0.0
    %245 = vmatpush2.msra.mxu0 0.0
    %246 = vmatprep.subr.mxu0 0.0
    %247 = vmatpush2.msra.mxu0 0.0
    %248 = vmatprep.subr.mxu0 0.0
    %249 = vmatpush2.msra.mxu0 0.0
    %250 = vmatprep.subr.mxu0 0.0
    %251 = vmatpush2.msra.mxu0 0.0
    %252 = vmatprep.subr.mxu0 0.0
    %253 = vmatpush2.msra.mxu0 0.0
    %254 = vmatprep.subr.mxu0 0.0
    %255 = vmatpush2.msra.mxu0 0.0
    %256 = vmatprep.subr.mxu0 0.0
    %257 = vmatpush2.msra.mxu0 0.0
    %258 = vmatprep.mubr.f32.mxu0 0.0
    %259 = vmatmul.mubr.f32.gmra.mxu0 %v189
    %v260 = vpop.f32.mrf.mxu0
    %v261 = vadd.f32 %v186, %v260
    %v262 = vpop.f32.mrf.mxu0
    %263 = vmatprep.mubr.f32.mxu0 0.0
    %264 = vmatmul.mubr.f32.gmra.mxu0 %v192
    %v265 = vpop.f32.mrf.mxu0
    %v266 = vadd.f32 %v186, %v265
    %v267 = vpop.f32.mrf.mxu0
    %268 = vdwg.mxu0
    %s269 = scalar_lea.vmem [#allocation8], 64
    %v270 = vld [vmem:[%s269] sm:$0xff]
    %v271 = vld [vmem:[%s269 + $0x8] sm:$0xff]
    %v272 = vld [vmem:[%s269 + $0x10] sm:$0xff]
    %v273 = vld [vmem:[%s269 + $0x18] sm:$0xff]
    %s274 = scalar_lea.vmem %s4, 2
    %v275 = vld [vmem:[%s274] sm:$0x1]
    %v277 = vlaneseq
    %v278 = vshrl.u32 %v277, 7
    %v279 = vsub.s32 0, %v278
    %v280 = vrot.slane %v275, %v279
    %v283 = vsel %vm93, %v80, 0
    %v286 = vsel %vm93, %v81, 0
    %288 = vmatprep.subr.mxu0 0.0
    %289 = vmatpush1.msra.mxu0 0.0
    %290 = vmatprep.subr.mxu0 0.0
    %291 = vmatpush1.msra.mxu0 0.0
    %292 = vmatprep.subr.mxu0 0.0
    %293 = vmatpush1.msra.mxu0 0.0
    %294 = vmatprep.subr.mxu0 0.0
    %295 = vmatpush1.msra.mxu0 0.0
    %296 = vmatprep.subr.mxu0 0.0
    %297 = vmatpush1.msra.mxu0 0.0
    %298 = vmatprep.subr.mxu0 0.0
    %299 = vmatpush1.msra.mxu0 0.0
    %300 = vmatprep.subr.mxu0 0.0
    %301 = vmatpush1.msra.mxu0 0.0
    %302 = vmatprep.subr.mxu0 0.0
    %303 = vmatpush1.msra.mxu0 0.0
    %304 = vmatprep.subr.mxu0 0.0
    %305 = vmatpush1.msra.mxu0 0.0
    %306 = vmatprep.subr.mxu0 0.0
    %307 = vmatpush1.msra.mxu0 0.0
    %308 = vmatprep.subr.mxu0 0.0
    %309 = vmatpush1.msra.mxu0 0.0
    %310 = vmatprep.subr.mxu0 0.0
    %311 = vmatpush1.msra.mxu0 0.0
    %312 = vmatprep.subr.mxu0 0.0
    %313 = vmatpush1.msra.mxu0 %v273
    %314 = vmatprep.subr.mxu0 0.0
    %315 = vmatpush1.msra.mxu0 %v272
    %316 = vmatprep.subr.mxu0 0.0
    %317 = vmatpush1.msra.mxu0 %v271
    %318 = vmatprep.subr.mxu0 0.0
    %319 = vmatpush1.msra.mxu0 %v270
    %320 = vmatprep.subr.mxu0 0.0
    %321 = vmatpush2.msra.mxu0 0.0
    %322 = vmatprep.subr.mxu0 0.0
    %323 = vmatpush2.msra.mxu0 0.0
    %324 = vmatprep.subr.mxu0 0.0
    %325 = vmatpush2.msra.mxu0 0.0
    %326 = vmatprep.subr.mxu0 0.0
    %327 = vmatpush2.msra.mxu0 0.0
    %328 = vmatprep.subr.mxu0 0.0
    %329 = vmatpush2.msra.mxu0 0.0
    %330 = vmatprep.subr.mxu0 0.0
    %331 = vmatpush2.msra.mxu0 0.0
    %332 = vmatprep.subr.mxu0 0.0
    %333 = vmatpush2.msra.mxu0 0.0
    %334 = vmatprep.subr.mxu0 0.0
    %335 = vmatpush2.msra.mxu0 0.0
    %336 = vmatprep.subr.mxu0 0.0
    %337 = vmatpush2.msra.mxu0 0.0
    %338 = vmatprep.subr.mxu0 0.0
    %339 = vmatpush2.msra.mxu0 0.0
    %340 = vmatprep.subr.mxu0 0.0
    %341 = vmatpush2.msra.mxu0 0.0
    %342 = vmatprep.subr.mxu0 0.0
    %343 = vmatpush2.msra.mxu0 0.0
    %344 = vmatprep.subr.mxu0 0.0
    %345 = vmatpush2.msra.mxu0 0.0
    %346 = vmatprep.subr.mxu0 0.0
    %347 = vmatpush2.msra.mxu0 0.0
    %348 = vmatprep.subr.mxu0 0.0
    %349 = vmatpush2.msra.mxu0 0.0
    %350 = vmatprep.subr.mxu0 0.0
    %351 = vmatpush2.msra.mxu0 0.0
    %352 = vmatprep.mubr.f32.mxu0 0.0
    %353 = vmatmul.mubr.f32.gmra.mxu0 %v283
    %v354 = vpop.f32.mrf.mxu0
    %v355 = vadd.f32 %v280, %v354
    %v356 = vpop.f32.mrf.mxu0
    %357 = vmatprep.mubr.f32.mxu0 0.0
    %358 = vmatmul.mubr.f32.gmra.mxu0 %v286
    %v359 = vpop.f32.mrf.mxu0
    %v360 = vadd.f32 %v280, %v359
    %v361 = vpop.f32.mrf.mxu0
    %362 = vdwg.mxu0
    %vm363 = vcmask 64512
    %v365 = vsel %vm363, %v167, 0
    %v368 = vsel %vm363, %v261, 0
    %370 = vmatprep.subr.mxu0 0.0
    %371 = vmatpush1.xpose.msra.mxu0 0.0
    %372 = vmatprep.subr.mxu0 0.0
    %373 = vmatpush1.xpose.msra.mxu0 0.0
    %374 = vmatprep.subr.mxu0 0.0
    %375 = vmatpush1.xpose.msra.mxu0 0.0
    %376 = vmatprep.subr.mxu0 0.0
    %377 = vmatpush1.xpose.msra.mxu0 0.0
    %378 = vmatprep.subr.mxu0 0.0
    %379 = vmatpush1.xpose.msra.mxu0 0.0
    %380 = vmatprep.subr.mxu0 0.0
    %381 = vmatpush1.xpose.msra.mxu0 0.0
    %382 = vmatprep.subr.mxu0 0.0
    %383 = vmatpush1.xpose.msra.mxu0 0.0
    %384 = vmatprep.subr.mxu0 0.0
    %385 = vmatpush1.xpose.msra.mxu0 0.0
    %386 = vmatprep.subr.mxu0 0.0
    %387 = vmatpush1.xpose.msra.mxu0 0.0
    %388 = vmatprep.subr.mxu0 0.0
    %389 = vmatpush1.xpose.msra.mxu0 0.0
    %390 = vmatprep.subr.mxu0 0.0
    %391 = vmatpush1.xpose.msra.mxu0 0.0
    %392 = vmatprep.subr.mxu0 0.0
    %393 = vmatpush1.xpose.msra.mxu0 0.0
    %394 = vmatprep.subr.mxu0 0.0
    %395 = vmatpush1.xpose.msra.mxu0 0.0
    %396 = vmatprep.subr.mxu0 0.0
    %397 = vmatpush1.xpose.msra.mxu0 0.0
    %398 = vmatprep.subr.mxu0 0.0
    %399 = vmatpush1.xpose.msra.mxu0 0.0
    %400 = vmatprep.subr.mxu0 0.0
    %401 = vmatpush1.xpose.msra.mxu0 %v368
    %402 = vmatprep.subr.mxu0 0.0
    %403 = vmatpush2.xpose.msra.mxu0 0.0
    %404 = vmatprep.subr.mxu0 0.0
    %405 = vmatpush2.xpose.msra.mxu0 0.0
    %406 = vmatprep.subr.mxu0 0.0
    %407 = vmatpush2.xpose.msra.mxu0 0.0
    %408 = vmatprep.subr.mxu0 0.0
    %409 = vmatpush2.xpose.msra.mxu0 0.0
    %410 = vmatprep.subr.mxu0 0.0
    %411 = vmatpush2.xpose.msra.mxu0 0.0
    %412 = vmatprep.subr.mxu0 0.0
    %413 = vmatpush2.xpose.msra.mxu0 0.0
    %414 = vmatprep.subr.mxu0 0.0
    %415 = vmatpush2.xpose.msra.mxu0 0.0
    %416 = vmatprep.subr.mxu0 0.0
    %417 = vmatpush2.xpose.msra.mxu0 0.0
    %418 = vmatprep.subr.mxu0 0.0
    %419 = vmatpush2.xpose.msra.mxu0 0.0
    %420 = vmatprep.subr.mxu0 0.0
    %421 = vmatpush2.xpose.msra.mxu0 0.0
    %422 = vmatprep.subr.mxu0 0.0
    %423 = vmatpush2.xpose.msra.mxu0 0.0
    %424 = vmatprep.subr.mxu0 0.0
    %425 = vmatpush2.xpose.msra.mxu0 0.0
    %426 = vmatprep.subr.mxu0 0.0
    %427 = vmatpush2.xpose.msra.mxu0 0.0
    %428 = vmatprep.subr.mxu0 0.0
    %429 = vmatpush2.xpose.msra.mxu0 0.0
    %430 = vmatprep.subr.mxu0 0.0
    %431 = vmatpush2.xpose.msra.mxu0 0.0
    %432 = vmatprep.subr.mxu0 0.0
    %433 = vmatpush2.xpose.msra.mxu0 0.0
    %434 = vmatprep.mubr.f32.mxu0 0.0
    %435 = vmatmul.mubr.f32.gmra.mxu0 %v365
    %v436 = vpop.f32.mrf.mxu0
    %v437 = vadd.f32 0.0, %v436
    %v438 = vpop.f32.mrf.mxu0
    %439 = vdwg.mxu0
    %v440 = vsel %vm363, %v437, -inf
    %441 = vmax.xlane.f32.xlu0 %v440
    %v442 = vpop.xlane.xlu0 %441
    %v443 = vsub.f32 %v437, %v442
    %v444 = vmul.f32 %v443, 1.442695
    %v445 = vpow.pop %v444
    %v446 = vsel %vm363, %v445, 0.0
    %447 = vadd.xlane.f32.xlu0 %v446
    %v448 = vpop.xlane.xlu0 %447
    %v449 = vrcp.pop %v448
    %v450 = vmul.f32 %v445, %v449
    %v452 = vsel %vm363, %v450, 0
    %454 = vmatprep.subr.mxu0 0.0
    %455 = vmatpush1.msra.mxu0 0.0
    %456 = vmatprep.subr.mxu0 0.0
    %457 = vmatpush1.msra.mxu0 0.0
    %458 = vmatprep.subr.mxu0 0.0
    %459 = vmatpush1.msra.mxu0 0.0
    %460 = vmatprep.subr.mxu0 0.0
    %461 = vmatpush1.msra.mxu0 0.0
    %462 = vmatprep.subr.mxu0 0.0
    %463 = vmatpush1.msra.mxu0 0.0
    %464 = vmatprep.subr.mxu0 0.0
    %465 = vmatpush1.msra.mxu0 0.0
    %466 = vmatprep.subr.mxu0 0.0
    %467 = vmatpush1.msra.mxu0 0.0
    %468 = vmatprep.subr.mxu0 0.0
    %469 = vmatpush1.msra.mxu0 0.0
    %470 = vmatprep.subr.mxu0 0.0
    %471 = vmatpush1.msra.mxu0 0.0
    %472 = vmatprep.subr.mxu0 0.0
    %473 = vmatpush1.msra.mxu0 0.0
    %474 = vmatprep.subr.mxu0 0.0
    %475 = vmatpush1.msra.mxu0 0.0
    %476 = vmatprep.subr.mxu0 0.0
    %477 = vmatpush1.msra.mxu0 0.0
    %478 = vmatprep.subr.mxu0 0.0
    %479 = vmatpush1.msra.mxu0 0.0
    %480 = vmatprep.subr.mxu0 0.0
    %481 = vmatpush1.msra.mxu0 0.0
    %482 = vmatprep.subr.mxu0 0.0
    %483 = vmatpush1.msra.mxu0 0.0
    %484 = vmatprep.subr.mxu0 0.0
    %485 = vmatpush1.msra.mxu0 %v355
    %486 = vmatprep.subr.mxu0 0.0
    %487 = vmatpush2.msra.mxu0 0.0
    %488 = vmatprep.subr.mxu0 0.0
    %489 = vmatpush2.msra.mxu0 0.0
    %490 = vmatprep.subr.mxu0 0.0
    %491 = vmatpush2.msra.mxu0 0.0
    %492 = vmatprep.subr.mxu0 0.0
    %493 = vmatpush2.msra.mxu0 0.0
    %494 = vmatprep.subr.mxu0 0.0
    %495 = vmatpush2.msra.mxu0 0.0
    %496 = vmatprep.subr.mxu0 0.0
    %497 = vmatpush2.msra.mxu0 0.0
    %498 = vmatprep.subr.mxu0 0.0
    %499 = vmatpush2.msra.mxu0 0.0
    %500 = vmatprep.subr.mxu0 0.0
    %501 = vmatpush2.msra.mxu0 0.0
    %502 = vmatprep.subr.mxu0 0.0
    %503 = vmatpush2.msra.mxu0 0.0
    %504 = vmatprep.subr.mxu0 0.0
    %505 = vmatpush2.msra.mxu0 0.0
    %506 = vmatprep.subr.mxu0 0.0
    %507 = vmatpush2.msra.mxu0 0.0
    %508 = vmatprep.subr.mxu0 0.0
    %509 = vmatpush2.msra.mxu0 0.0
    %510 = vmatprep.subr.mxu0 0.0
    %511 = vmatpush2.msra.mxu0 0.0
    %512 = vmatprep.subr.mxu0 0.0
    %513 = vmatpush2.msra.mxu0 0.0
    %514 = vmatprep.subr.mxu0 0.0
    %515 = vmatpush2.msra.mxu0 0.0
    %516 = vmatprep.subr.mxu0 0.0
    %517 = vmatpush2.msra.mxu0 0.0
    %518 = vmatprep.mubr.f32.mxu0 0.0
    %519 = vmatmul.mubr.f32.gmra.mxu0 %v452
    %v520 = vpop.f32.mrf.mxu0
    %v521 = vadd.f32 0.0, %v520
    %v522 = vpop.f32.mrf.mxu0
    %523 = vdwg.mxu0
    %524 = vrot.lane.b32.xlu0 %v167, 120
    %v525 = vpop.permute.xlu0 %524
    %526 = vrot.lane.b32.xlu0 %v261, 120
    %v527 = vpop.permute.xlu0 %526
    %v528 = vsel %vm363, %v525, 0
    %v530 = vsel %vm363, %v527, 0
    %532 = vmatprep.subr.mxu0 0.0
    %533 = vmatpush1.xpose.msra.mxu0 0.0
    %534 = vmatprep.subr.mxu0 0.0
    %535 = vmatpush1.xpose.msra.mxu0 0.0
    %536 = vmatprep.subr.mxu0 0.0
    %537 = vmatpush1.xpose.msra.mxu0 0.0
    %538 = vmatprep.subr.mxu0 0.0
    %539 = vmatpush1.xpose.msra.mxu0 0.0
    %540 = vmatprep.subr.mxu0 0.0
    %541 = vmatpush1.xpose.msra.mxu0 0.0
    %542 = vmatprep.subr.mxu0 0.0
    %543 = vmatpush1.xpose.msra.mxu0 0.0
    %544 = vmatprep.subr.mxu0 0.0
    %545 = vmatpush1.xpose.msra.mxu0 0.0
    %546 = vmatprep.subr.mxu0 0.0
    %547 = vmatpush1.xpose.msra.mxu0 0.0
    %548 = vmatprep.subr.mxu0 0.0
    %549 = vmatpush1.xpose.msra.mxu0 0.0
    %550 = vmatprep.subr.mxu0 0.0
    %551 = vmatpush1.xpose.msra.mxu0 0.0
    %552 = vmatprep.subr.mxu0 0.0
    %553 = vmatpush1.xpose.msra.mxu0 0.0
    %554 = vmatprep.subr.mxu0 0.0
    %555 = vmatpush1.xpose.msra.mxu0 0.0
    %556 = vmatprep.subr.mxu0 0.0
    %557 = vmatpush1.xpose.msra.mxu0 0.0
    %558 = vmatprep.subr.mxu0 0.0
    %559 = vmatpush1.xpose.msra.mxu0 0.0
    %560 = vmatprep.subr.mxu0 0.0
    %561 = vmatpush1.xpose.msra.mxu0 0.0
    %562 = vmatprep.subr.mxu0 0.0
    %563 = vmatpush1.xpose.msra.mxu0 %v530
    %564 = vmatprep.subr.mxu0 0.0
    %565 = vmatpush2.xpose.msra.mxu0 0.0
    %566 = vmatprep.subr.mxu0 0.0
    %567 = vmatpush2.xpose.msra.mxu0 0.0
    %568 = vmatprep.subr.mxu0 0.0
    %569 = vmatpush2.xpose.msra.mxu0 0.0
    %570 = vmatprep.subr.mxu0 0.0
    %571 = vmatpush2.xpose.msra.mxu0 0.0
    %572 = vmatprep.subr.mxu0 0.0
    %573 = vmatpush2.xpose.msra.mxu0 0.0
    %574 = vmatprep.subr.mxu0 0.0
    %575 = vmatpush2.xpose.msra.mxu0 0.0
    %576 = vmatprep.subr.mxu0 0.0
    %577 = vmatpush2.xpose.msra.mxu0 0.0
    %578 = vmatprep.subr.mxu0 0.0
    %579 = vmatpush2.xpose.msra.mxu0 0.0
    %580 = vmatprep.subr.mxu0 0.0
    %581 = vmatpush2.xpose.msra.mxu0 0.0
    %582 = vmatprep.subr.mxu0 0.0
    %583 = vmatpush2.xpose.msra.mxu0 0.0
    %584 = vmatprep.subr.mxu0 0.0
    %585 = vmatpush2.xpose.msra.mxu0 0.0
    %586 = vmatprep.subr.mxu0 0.0
    %587 = vmatpush2.xpose.msra.mxu0 0.0
    %588 = vmatprep.subr.mxu0 0.0
    %589 = vmatpush2.xpose.msra.mxu0 0.0
    %590 = vmatprep.subr.mxu0 0.0
    %591 = vmatpush2.xpose.msra.mxu0 0.0
    %592 = vmatprep.subr.mxu0 0.0
    %593 = vmatpush2.xpose.msra.mxu0 0.0
    %594 = vmatprep.subr.mxu0 0.0
    %595 = vmatpush2.xpose.msra.mxu0 0.0
    %596 = vmatprep.mubr.f32.mxu0 0.0
    %597 = vmatmul.mubr.f32.gmra.mxu0 %v528
    %v598 = vpop.f32.mrf.mxu0
    %v599 = vadd.f32 0.0, %v598
    %v600 = vpop.f32.mrf.mxu0
    %601 = vdwg.mxu0
    %v602 = vsel %vm363, %v599, -inf
    %603 = vmax.xlane.f32.xlu0 %v602
    %v604 = vpop.xlane.xlu0 %603
    %v605 = vsub.f32 %v599, %v604
    %v606 = vmul.f32 %v605, 1.442695
    %v607 = vpow.pop %v606
    %v608 = vsel %vm363, %v607, 0.0
    %609 = vadd.xlane.f32.xlu0 %v608
    %v610 = vpop.xlane.xlu0 %609
    %v611 = vrcp.pop %v610
    %v612 = vmul.f32 %v607, %v611
    %614 = vrot.lane.b32.xlu0 %v355, 120
    %v615 = vpop.permute.xlu0 %614
    %v618 = vsel %vm363, %v612, 0
    %620 = vmatprep.subr.mxu0 0.0
    %621 = vmatpush1.msra.mxu0 0.0
    %622 = vmatprep.subr.mxu0 0.0
    %623 = vmatpush1.msra.mxu0 0.0
    %624 = vmatprep.subr.mxu0 0.0
    %625 = vmatpush1.msra.mxu0 0.0
    %626 = vmatprep.subr.mxu0 0.0
    %627 = vmatpush1.msra.mxu0 0.0
    %628 = vmatprep.subr.mxu0 0.0
    %629 = vmatpush1.msra.mxu0 0.0
    %630 = vmatprep.subr.mxu0 0.0
    %631 = vmatpush1.msra.mxu0 0.0
    %632 = vmatprep.subr.mxu0 0.0
    %633 = vmatpush1.msra.mxu0 0.0
    %634 = vmatprep.subr.mxu0 0.0
    %635 = vmatpush1.msra.mxu0 0.0
    %636 = vmatprep.subr.mxu0 0.0
    %637 = vmatpush1.msra.mxu0 0.0
    %638 = vmatprep.subr.mxu0 0.0
    %639 = vmatpush1.msra.mxu0 0.0
    %640 = vmatprep.subr.mxu0 0.0
    %641 = vmatpush1.msra.mxu0 0.0
    %642 = vmatprep.subr.mxu0 0.0
    %643 = vmatpush1.msra.mxu0 0.0
    %644 = vmatprep.subr.mxu0 0.0
    %645 = vmatpush1.msra.mxu0 0.0
    %646 = vmatprep.subr.mxu0 0.0
    %647 = vmatpush1.msra.mxu0 0.0
    %648 = vmatprep.subr.mxu0 0.0
    %649 = vmatpush1.msra.mxu0 0.0
    %650 = vmatprep.subr.mxu0 0.0
    %651 = vmatpush1.msra.mxu0 %v615
    %652 = vmatprep.subr.mxu0 0.0
    %653 = vmatpush2.msra.mxu0 0.0
    %654 = vmatprep.subr.mxu0 0.0
    %655 = vmatpush2.msra.mxu0 0.0
    %656 = vmatprep.subr.mxu0 0.0
    %657 = vmatpush2.msra.mxu0 0.0
    %658 = vmatprep.subr.mxu0 0.0
    %659 = vmatpush2.msra.mxu0 0.0
    %660 = vmatprep.subr.mxu0 0.0
    %661 = vmatpush2.msra.mxu0 0.0
    %662 = vmatprep.subr.mxu0 0.0
    %663 = vmatpush2.msra.mxu0 0.0
    %664 = vmatprep.subr.mxu0 0.0
    %665 = vmatpush2.msra.mxu0 0.0
    %666 = vmatprep.subr.mxu0 0.0
    %667 = vmatpush2.msra.mxu0 0.0
    %668 = vmatprep.subr.mxu0 0.0
    %669 = vmatpush2.msra.mxu0 0.0
    %670 = vmatprep.subr.mxu0 0.0
    %671 = vmatpush2.msra.mxu0 0.0
    %672 = vmatprep.subr.mxu0 0.0
    %673 = vmatpush2.msra.mxu0 0.0
    %674 = vmatprep.subr.mxu0 0.0
    %675 = vmatpush2.msra.mxu0 0.0
    %676 = vmatprep.subr.mxu0 0.0
    %677 = vmatpush2.msra.mxu0 0.0
    %678 = vmatprep.subr.mxu0 0.0
    %679 = vmatpush2.msra.mxu0 0.0
    %680 = vmatprep.subr.mxu0 0.0
    %681 = vmatpush2.msra.mxu0 0.0
    %682 = vmatprep.subr.mxu0 0.0
    %683 = vmatpush2.msra.mxu0 0.0
    %684 = vmatprep.mubr.f32.mxu0 0.0
    %685 = vmatmul.mubr.f32.gmra.mxu0 %v618
    %v686 = vpop.f32.mrf.mxu0
    %v687 = vadd.f32 0.0, %v686
    %v688 = vpop.f32.mrf.mxu0
    %689 = vdwg.mxu0
    %690 = vrot.lane.b32.xlu0 %v167, 112
    %v691 = vpop.permute.xlu0 %690
    %692 = vrot.lane.b32.xlu0 %v261, 112
    %v693 = vpop.permute.xlu0 %692
    %v694 = vsel %vm363, %v691, 0
    %v696 = vsel %vm363, %v693, 0
    %698 = vmatprep.subr.mxu0 0.0
    %699 = vmatpush1.xpose.msra.mxu0 0.0
    %700 = vmatprep.subr.mxu0 0.0
    %701 = vmatpush1.xpose.msra.mxu0 0.0
    %702 = vmatprep.subr.mxu0 0.0
    %703 = vmatpush1.xpose.msra.mxu0 0.0
    %704 = vmatprep.subr.mxu0 0.0
    %705 = vmatpush1.xpose.msra.mxu0 0.0
    %706 = vmatprep.subr.mxu0 0.0
    %707 = vmatpush1.xpose.msra.mxu0 0.0
    %708 = vmatprep.subr.mxu0 0.0
    %709 = vmatpush1.xpose.msra.mxu0 0.0
    %710 = vmatprep.subr.mxu0 0.0
    %711 = vmatpush1.xpose.msra.mxu0 0.0
    %712 = vmatprep.subr.mxu0 0.0
    %713 = vmatpush1.xpose.msra.mxu0 0.0
    %714 = vmatprep.subr.mxu0 0.0
    %715 = vmatpush1.xpose.msra.mxu0 0.0
    %716 = vmatprep.subr.mxu0 0.0
    %717 = vmatpush1.xpose.msra.mxu0 0.0
    %718 = vmatprep.subr.mxu0 0.0
    %719 = vmatpush1.xpose.msra.mxu0 0.0
    %720 = vmatprep.subr.mxu0 0.0
    %721 = vmatpush1.xpose.msra.mxu0 0.0
    %722 = vmatprep.subr.mxu0 0.0
    %723 = vmatpush1.xpose.msra.mxu0 0.0
    %724 = vmatprep.subr.mxu0 0.0
    %725 = vmatpush1.xpose.msra.mxu0 0.0
    %726 = vmatprep.subr.mxu0 0.0
    %727 = vmatpush1.xpose.msra.mxu0 0.0
    %728 = vmatprep.subr.mxu0 0.0
    %729 = vmatpush1.xpose.msra.mxu0 %v696
    %730 = vmatprep.subr.mxu0 0.0
    %731 = vmatpush2.xpose.msra.mxu0 0.0
    %732 = vmatprep.subr.mxu0 0.0
    %733 = vmatpush2.xpose.msra.mxu0 0.0
    %734 = vmatprep.subr.mxu0 0.0
    %735 = vmatpush2.xpose.msra.mxu0 0.0
    %736 = vmatprep.subr.mxu0 0.0
    %737 = vmatpush2.xpose.msra.mxu0 0.0
    %738 = vmatprep.subr.mxu0 0.0
    %739 = vmatpush2.xpose.msra.mxu0 0.0
    %740 = vmatprep.subr.mxu0 0.0
    %741 = vmatpush2.xpose.msra.mxu0 0.0
    %742 = vmatprep.subr.mxu0 0.0
    %743 = vmatpush2.xpose.msra.mxu0 0.0
    %744 = vmatprep.subr.mxu0 0.0
    %745 = vmatpush2.xpose.msra.mxu0 0.0
    %746 = vmatprep.subr.mxu0 0.0
    %747 = vmatpush2.xpose.msra.mxu0 0.0
    %748 = vmatprep.subr.mxu0 0.0
    %749 = vmatpush2.xpose.msra.mxu0 0.0
    %750 = vmatprep.subr.mxu0 0.0
    %751 = vmatpush2.xpose.msra.mxu0 0.0
    %752 = vmatprep.subr.mxu0 0.0
    %753 = vmatpush2.xpose.msra.mxu0 0.0
    %754 = vmatprep.subr.mxu0 0.0
    %755 = vmatpush2.xpose.msra.mxu0 0.0
    %756 = vmatprep.subr.mxu0 0.0
    %757 = vmatpush2.xpose.msra.mxu0 0.0
    %758 = vmatprep.subr.mxu0 0.0
    %759 = vmatpush2.xpose.msra.mxu0 0.0
    %760 = vmatprep.subr.mxu0 0.0
    %761 = vmatpush2.xpose.msra.mxu0 0.0
    %762 = vmatprep.mubr.f32.mxu0 0.0
    %763 = vmatmul.mubr.f32.gmra.mxu0 %v694
    %v764 = vpop.f32.mrf.mxu0
    %v765 = vadd.f32 0.0, %v764
    %v766 = vpop.f32.mrf.mxu0
    %767 = vdwg.mxu0
    %v768 = vsel %vm363, %v765, -inf
    %769 = vmax.xlane.f32.xlu0 %v768
    %v770 = vpop.xlane.xlu0 %769
    %v771 = vsub.f32 %v765, %v770
    %v772 = vmul.f32 %v771, 1.442695
    %v773 = vpow.pop %v772
    %v774 = vsel %vm363, %v773, 0.0
    %775 = vadd.xlane.f32.xlu0 %v774
    %v776 = vpop.xlane.xlu0 %775
    %v777 = vrcp.pop %v776
    %v778 = vmul.f32 %v773, %v777
    %779 = vrot.lane.b32.xlu0 %v355, 112
    %v780 = vpop.permute.xlu0 %779
    %v783 = vsel %vm363, %v778, 0
    %785 = vmatprep.subr.mxu0 0.0
    %786 = vmatpush1.msra.mxu0 0.0
    %787 = vmatprep.subr.mxu0 0.0
    %788 = vmatpush1.msra.mxu0 0.0
    %789 = vmatprep.subr.mxu0 0.0
    %790 = vmatpush1.msra.mxu0 0.0
    %791 = vmatprep.subr.mxu0 0.0
    %792 = vmatpush1.msra.mxu0 0.0
    %793 = vmatprep.subr.mxu0 0.0
    %794 = vmatpush1.msra.mxu0 0.0
    %795 = vmatprep.subr.mxu0 0.0
    %796 = vmatpush1.msra.mxu0 0.0
    %797 = vmatprep.subr.mxu0 0.0
    %798 = vmatpush1.msra.mxu0 0.0
    %799 = vmatprep.subr.mxu0 0.0
    %800 = vmatpush1.msra.mxu0 0.0
    %801 = vmatprep.subr.mxu0 0.0
    %802 = vmatpush1.msra.mxu0 0.0
    %803 = vmatprep.subr.mxu0 0.0
    %804 = vmatpush1.msra.mxu0 0.0
    %805 = vmatprep.subr.mxu0 0.0
    %806 = vmatpush1.msra.mxu0 0.0
    %807 = vmatprep.subr.mxu0 0.0
    %808 = vmatpush1.msra.mxu0 0.0
    %809 = vmatprep.subr.mxu0 0.0
    %810 = vmatpush1.msra.mxu0 0.0
    %811 = vmatprep.subr.mxu0 0.0
    %812 = vmatpush1.msra.mxu0 0.0
    %813 = vmatprep.subr.mxu0 0.0
    %814 = vmatpush1.msra.mxu0 0.0
    %815 = vmatprep.subr.mxu0 0.0
    %816 = vmatpush1.msra.mxu0 %v780
    %817 = vmatprep.subr.mxu0 0.0
    %818 = vmatpush2.msra.mxu0 0.0
    %819 = vmatprep.subr.mxu0 0.0
    %820 = vmatpush2.msra.mxu0 0.0
    %821 = vmatprep.subr.mxu0 0.0
    %822 = vmatpush2.msra.mxu0 0.0
    %823 = vmatprep.subr.mxu0 0.0
    %824 = vmatpush2.msra.mxu0 0.0
    %825 = vmatprep.subr.mxu0 0.0
    %826 = vmatpush2.msra.mxu0 0.0
    %827 = vmatprep.subr.mxu0 0.0
    %828 = vmatpush2.msra.mxu0 0.0
    %829 = vmatprep.subr.mxu0 0.0
    %830 = vmatpush2.msra.mxu0 0.0
    %831 = vmatprep.subr.mxu0 0.0
    %832 = vmatpush2.msra.mxu0 0.0
    %833 = vmatprep.subr.mxu0 0.0
    %834 = vmatpush2.msra.mxu0 0.0
    %835 = vmatprep.subr.mxu0 0.0
    %836 = vmatpush2.msra.mxu0 0.0
    %837 = vmatprep.subr.mxu0 0.0
    %838 = vmatpush2.msra.mxu0 0.0
    %839 = vmatprep.subr.mxu0 0.0
    %840 = vmatpush2.msra.mxu0 0.0
    %841 = vmatprep.subr.mxu0 0.0
    %842 = vmatpush2.msra.mxu0 0.0
    %843 = vmatprep.subr.mxu0 0.0
    %844 = vmatpush2.msra.mxu0 0.0
    %845 = vmatprep.subr.mxu0 0.0
    %846 = vmatpush2.msra.mxu0 0.0
    %847 = vmatprep.subr.mxu0 0.0
    %848 = vmatpush2.msra.mxu0 0.0
    %849 = vmatprep.mubr.f32.mxu0 0.0
    %850 = vmatmul.mubr.f32.gmra.mxu0 %v783
    %v851 = vpop.f32.mrf.mxu0
    %v852 = vadd.f32 0.0, %v851
    %v853 = vpop.f32.mrf.mxu0
    %854 = vdwg.mxu0
    %855 = vrot.lane.b32.xlu0 %v167, 104
    %v856 = vpop.permute.xlu0 %855
    %857 = vrot.lane.b32.xlu0 %v261, 104
    %v858 = vpop.permute.xlu0 %857
    %v859 = vsel %vm363, %v856, 0
    %v861 = vsel %vm363, %v858, 0
    %863 = vmatprep.subr.mxu0 0.0
    %864 = vmatpush1.xpose.msra.mxu0 0.0
    %865 = vmatprep.subr.mxu0 0.0
    %866 = vmatpush1.xpose.msra.mxu0 0.0
    %867 = vmatprep.subr.mxu0 0.0
    %868 = vmatpush1.xpose.msra.mxu0 0.0
    %869 = vmatprep.subr.mxu0 0.0
    %870 = vmatpush1.xpose.msra.mxu0 0.0
    %871 = vmatprep.subr.mxu0 0.0
    %872 = vmatpush1.xpose.msra.mxu0 0.0
    %873 = vmatprep.subr.mxu0 0.0
    %874 = vmatpush1.xpose.msra.mxu0 0.0
    %875 = vmatprep.subr.mxu0 0.0
    %876 = vmatpush1.xpose.msra.mxu0 0.0
    %877 = vmatprep.subr.mxu0 0.0
    %878 = vmatpush1.xpose.msra.mxu0 0.0
    %879 = vmatprep.subr.mxu0 0.0
    %880 = vmatpush1.xpose.msra.mxu0 0.0
    %881 = vmatprep.subr.mxu0 0.0
    %882 = vmatpush1.xpose.msra.mxu0 0.0
    %883 = vmatprep.subr.mxu0 0.0
    %884 = vmatpush1.xpose.msra.mxu0 0.0
    %885 = vmatprep.subr.mxu0 0.0
    %886 = vmatpush1.xpose.msra.mxu0 0.0
    %887 = vmatprep.subr.mxu0 0.0
    %888 = vmatpush1.xpose.msra.mxu0 0.0
    %889 = vmatprep.subr.mxu0 0.0
    %890 = vmatpush1.xpose.msra.mxu0 0.0
    %891 = vmatprep.subr.mxu0 0.0
    %892 = vmatpush1.xpose.msra.mxu0 0.0
    %893 = vmatprep.subr.mxu0 0.0
    %894 = vmatpush1.xpose.msra.mxu0 %v861
    %895 = vmatprep.subr.mxu0 0.0
    %896 = vmatpush2.xpose.msra.mxu0 0.0
    %897 = vmatprep.subr.mxu0 0.0
    %898 = vmatpush2.xpose.msra.mxu0 0.0
    %899 = vmatprep.subr.mxu0 0.0
    %900 = vmatpush2.xpose.msra.mxu0 0.0
    %901 = vmatprep.subr.mxu0 0.0
    %902 = vmatpush2.xpose.msra.mxu0 0.0
    %903 = vmatprep.subr.mxu0 0.0
    %904 = vmatpush2.xpose.msra.mxu0 0.0
    %905 = vmatprep.subr.mxu0 0.0
    %906 = vmatpush2.xpose.msra.mxu0 0.0
    %907 = vmatprep.subr.mxu0 0.0
    %908 = vmatpush2.xpose.msra.mxu0 0.0
    %909 = vmatprep.subr.mxu0 0.0
    %910 = vmatpush2.xpose.msra.mxu0 0.0
    %911 = vmatprep.subr.mxu0 0.0
    %912 = vmatpush2.xpose.msra.mxu0 0.0
    %913 = vmatprep.subr.mxu0 0.0
    %914 = vmatpush2.xpose.msra.mxu0 0.0
    %915 = vmatprep.subr.mxu0 0.0
    %916 = vmatpush2.xpose.msra.mxu0 0.0
    %917 = vmatprep.subr.mxu0 0.0
    %918 = vmatpush2.xpose.msra.mxu0 0.0
    %919 = vmatprep.subr.mxu0 0.0
    %920 = vmatpush2.xpose.msra.mxu0 0.0
    %921 = vmatprep.subr.mxu0 0.0
    %922 = vmatpush2.xpose.msra.mxu0 0.0
    %923 = vmatprep.subr.mxu0 0.0
    %924 = vmatpush2.xpose.msra.mxu0 0.0
    %925 = vmatprep.subr.mxu0 0.0
    %926 = vmatpush2.xpose.msra.mxu0 0.0
    %927 = vmatprep.mubr.f32.mxu0 0.0
    %928 = vmatmul.mubr.f32.gmra.mxu0 %v859
    %v929 = vpop.f32.mrf.mxu0
    %v930 = vadd.f32 0.0, %v929
    %v931 = vpop.f32.mrf.mxu0
    %932 = vdwg.mxu0
    %v933 = vsel %vm363, %v930, -inf
    %934 = vmax.xlane.f32.xlu0 %v933
    %v935 = vpop.xlane.xlu0 %934
    %v936 = vsub.f32 %v930, %v935
    %v937 = vmul.f32 %v936, 1.442695
    %v938 = vpow.pop %v937
    %v939 = vsel %vm363, %v938, 0.0
    %940 = vadd.xlane.f32.xlu0 %v939
    %v941 = vpop.xlane.xlu0 %940
    %v942 = vrcp.pop %v941
    %v943 = vmul.f32 %v938, %v942
    %944 = vrot.lane.b32.xlu0 %v355, 104
    %v945 = vpop.permute.xlu0 %944
    %v948 = vsel %vm363, %v943, 0
    %950 = vmatprep.subr.mxu0 0.0
    %951 = vmatpush1.msra.mxu0 0.0
    %952 = vmatprep.subr.mxu0 0.0
    %953 = vmatpush1.msra.mxu0 0.0
    %954 = vmatprep.subr.mxu0 0.0
    %955 = vmatpush1.msra.mxu0 0.0
    %956 = vmatprep.subr.mxu0 0.0
    %957 = vmatpush1.msra.mxu0 0.0
    %958 = vmatprep.subr.mxu0 0.0
    %959 = vmatpush1.msra.mxu0 0.0
    %960 = vmatprep.subr.mxu0 0.0
    %961 = vmatpush1.msra.mxu0 0.0
    %962 = vmatprep.subr.mxu0 0.0
    %963 = vmatpush1.msra.mxu0 0.0
    %964 = vmatprep.subr.mxu0 0.0
    %965 = vmatpush1.msra.mxu0 0.0
    %966 = vmatprep.subr.mxu0 0.0
    %967 = vmatpush1.msra.mxu0 0.0
    %968 = vmatprep.subr.mxu0 0.0
    %969 = vmatpush1.msra.mxu0 0.0
    %970 = vmatprep.subr.mxu0 0.0
    %971 = vmatpush1.msra.mxu0 0.0
    %972 = vmatprep.subr.mxu0 0.0
    %973 = vmatpush1.msra.mxu0 0.0
    %974 = vmatprep.subr.mxu0 0.0
    %975 = vmatpush1.msra.mxu0 0.0
    %976 = vmatprep.subr.mxu0 0.0
    %977 = vmatpush1.msra.mxu0 0.0
    %978 = vmatprep.subr.mxu0 0.0
    %979 = vmatpush1.msra.mxu0 0.0
    %980 = vmatprep.subr.mxu0 0.0
    %981 = vmatpush1.msra.mxu0 %v945
    %982 = vmatprep.subr.mxu0 0.0
    %983 = vmatpush2.msra.mxu0 0.0
    %984 = vmatprep.subr.mxu0 0.0
    %985 = vmatpush2.msra.mxu0 0.0
    %986 = vmatprep.subr.mxu0 0.0
    %987 = vmatpush2.msra.mxu0 0.0
    %988 = vmatprep.subr.mxu0 0.0
    %989 = vmatpush2.msra.mxu0 0.0
    %990 = vmatprep.subr.mxu0 0.0
    %991 = vmatpush2.msra.mxu0 0.0
    %992 = vmatprep.subr.mxu0 0.0
    %993 = vmatpush2.msra.mxu0 0.0
    %994 = vmatprep.subr.mxu0 0.0
    %995 = vmatpush2.msra.mxu0 0.0
    %996 = vmatprep.subr.mxu0 0.0
    %997 = vmatpush2.msra.mxu0 0.0
    %998 = vmatprep.subr.mxu0 0.0
    %999 = vmatpush2.msra.mxu0 0.0
    %1000 = vmatprep.subr.mxu0 0.0
    %1001 = vmatpush2.msra.mxu0 0.0
    %1002 = vmatprep.subr.mxu0 0.0
    %1003 = vmatpush2.msra.mxu0 0.0
    %1004 = vmatprep.subr.mxu0 0.0
    %1005 = vmatpush2.msra.mxu0 0.0
    %1006 = vmatprep.subr.mxu0 0.0
    %1007 = vmatpush2.msra.mxu0 0.0
    %1008 = vmatprep.subr.mxu0 0.0
    %1009 = vmatpush2.msra.mxu0 0.0
    %1010 = vmatprep.subr.mxu0 0.0
    %1011 = vmatpush2.msra.mxu0 0.0
    %1012 = vmatprep.subr.mxu0 0.0
    %1013 = vmatpush2.msra.mxu0 0.0
    %1014 = vmatprep.mubr.f32.mxu0 0.0
    %1015 = vmatmul.mubr.f32.gmra.mxu0 %v948
    %v1016 = vpop.f32.mrf.mxu0
    %v1017 = vadd.f32 0.0, %v1016
    %v1018 = vpop.f32.mrf.mxu0
    %1019 = vdwg.mxu0
    %1021 = vrot.lane.b32.xlu0 %v687, 8
    %v1022 = vpop.permute.xlu0 %1021
    %1025 = vrot.lane.b32.xlu0 %v852, 16
    %v1026 = vpop.permute.xlu0 %1025
    %1029 = vrot.lane.b32.xlu0 %v1017, 24
    %v1030 = vpop.permute.xlu0 %1029
    %v1032 = vsel %vm363, %v521, %v1022
    %vm1033 = vcmask 130048
    %v1034 = vsel %vm1033, %v1032, %v1026
    %vm1035 = vcmask 195584
    %v1036 = vsel %vm1035, %v1034, %v1030
    %v1038 = vsel %vm363, %v172, 0
    %v1041 = vsel %vm363, %v266, 0
    %1043 = vmatprep.subr.mxu0 0.0
    %1044 = vmatpush1.xpose.msra.mxu0 0.0
    %1045 = vmatprep.subr.mxu0 0.0
    %1046 = vmatpush1.xpose.msra.mxu0 0.0
    %1047 = vmatprep.subr.mxu0 0.0
    %1048 = vmatpush1.xpose.msra.mxu0 0.0
    %1049 = vmatprep.subr.mxu0 0.0
    %1050 = vmatpush1.xpose.msra.mxu0 0.0
    %1051 = vmatprep.subr.mxu0 0.0
    %1052 = vmatpush1.xpose.msra.mxu0 0.0
    %1053 = vmatprep.subr.mxu0 0.0
    %1054 = vmatpush1.xpose.msra.mxu0 0.0
    %1055 = vmatprep.subr.mxu0 0.0
    %1056 = vmatpush1.xpose.msra.mxu0 0.0
    %1057 = vmatprep.subr.mxu0 0.0
    %1058 = vmatpush1.xpose.msra.mxu0 0.0
    %1059 = vmatprep.subr.mxu0 0.0
    %1060 = vmatpush1.xpose.msra.mxu0 0.0
    %1061 = vmatprep.subr.mxu0 0.0
    %1062 = vmatpush1.xpose.msra.mxu0 0.0
    %1063 = vmatprep.subr.mxu0 0.0
    %1064 = vmatpush1.xpose.msra.mxu0 0.0
    %1065 = vmatprep.subr.mxu0 0.0
    %1066 = vmatpush1.xpose.msra.mxu0 0.0
    %1067 = vmatprep.subr.mxu0 0.0
    %1068 = vmatpush1.xpose.msra.mxu0 0.0
    %1069 = vmatprep.subr.mxu0 0.0
    %1070 = vmatpush1.xpose.msra.mxu0 0.0
    %1071 = vmatprep.subr.mxu0 0.0
    %1072 = vmatpush1.xpose.msra.mxu0 0.0
    %1073 = vmatprep.subr.mxu0 0.0
    %1074 = vmatpush1.xpose.msra.mxu0 %v1041
    %1075 = vmatprep.subr.mxu0 0.0
    %1076 = vmatpush2.xpose.msra.mxu0 0.0
    %1077 = vmatprep.subr.mxu0 0.0
    %1078 = vmatpush2.xpose.msra.mxu0 0.0
    %1079 = vmatprep.subr.mxu0 0.0
    %1080 = vmatpush2.xpose.msra.mxu0 0.0
    %1081 = vmatprep.subr.mxu0 0.0
    %1082 = vmatpush2.xpose.msra.mxu0 0.0
    %1083 = vmatprep.subr.mxu0 0.0
    %1084 = vmatpush2.xpose.msra.mxu0 0.0
    %1085 = vmatprep.subr.mxu0 0.0
    %1086 = vmatpush2.xpose.msra.mxu0 0.0
    %1087 = vmatprep.subr.mxu0 0.0
    %1088 = vmatpush2.xpose.msra.mxu0 0.0
    %1089 = vmatprep.subr.mxu0 0.0
    %1090 = vmatpush2.xpose.msra.mxu0 0.0
    %1091 = vmatprep.subr.mxu0 0.0
    %1092 = vmatpush2.xpose.msra.mxu0 0.0
    %1093 = vmatprep.subr.mxu0 0.0
    %1094 = vmatpush2.xpose.msra.mxu0 0.0
    %1095 = vmatprep.subr.mxu0 0.0
    %1096 = vmatpush2.xpose.msra.mxu0 0.0
    %1097 = vmatprep.subr.mxu0 0.0
    %1098 = vmatpush2.xpose.msra.mxu0 0.0
    %1099 = vmatprep.subr.mxu0 0.0
    %1100 = vmatpush2.xpose.msra.mxu0 0.0
    %1101 = vmatprep.subr.mxu0 0.0
    %1102 = vmatpush2.xpose.msra.mxu0 0.0
    %1103 = vmatprep.subr.mxu0 0.0
    %1104 = vmatpush2.xpose.msra.mxu0 0.0
    %1105 = vmatprep.subr.mxu0 0.0
    %1106 = vmatpush2.xpose.msra.mxu0 0.0
    %1107 = vmatprep.mubr.f32.mxu0 0.0
    %1108 = vmatmul.mubr.f32.gmra.mxu0 %v1038
    %v1109 = vpop.f32.mrf.mxu0
    %v1110 = vadd.f32 0.0, %v1109
    %v1111 = vpop.f32.mrf.mxu0
    %1112 = vdwg.mxu0
    %v1113 = vsel %vm363, %v1110, -inf
    %1114 = vmax.xlane.f32.xlu0 %v1113
    %v1115 = vpop.xlane.xlu0 %1114
    %v1116 = vsub.f32 %v1110, %v1115
    %v1117 = vmul.f32 %v1116, 1.442695
    %v1118 = vpow.pop %v1117
    %v1119 = vsel %vm363, %v1118, 0.0
    %1120 = vadd.xlane.f32.xlu0 %v1119
    %v1121 = vpop.xlane.xlu0 %1120
    %v1122 = vrcp.pop %v1121
    %v1123 = vmul.f32 %v1118, %v1122
    %v1125 = vsel %vm363, %v1123, 0
    %1127 = vmatprep.subr.mxu0 0.0
    %1128 = vmatpush1.msra.mxu0 0.0
    %1129 = vmatprep.subr.mxu0 0.0
    %1130 = vmatpush1.msra.mxu0 0.0
    %1131 = vmatprep.subr.mxu0 0.0
    %1132 = vmatpush1.msra.mxu0 0.0
    %1133 = vmatprep.subr.mxu0 0.0
    %1134 = vmatpush1.msra.mxu0 0.0
    %1135 = vmatprep.subr.mxu0 0.0
    %1136 = vmatpush1.msra.mxu0 0.0
    %1137 = vmatprep.subr.mxu0 0.0
    %1138 = vmatpush1.msra.mxu0 0.0
    %1139 = vmatprep.subr.mxu0 0.0
    %1140 = vmatpush1.msra.mxu0 0.0
    %1141 = vmatprep.subr.mxu0 0.0
    %1142 = vmatpush1.msra.mxu0 0.0
    %1143 = vmatprep.subr.mxu0 0.0
    %1144 = vmatpush1.msra.mxu0 0.0
    %1145 = vmatprep.subr.mxu0 0.0
    %1146 = vmatpush1.msra.mxu0 0.0
    %1147 = vmatprep.subr.mxu0 0.0
    %1148 = vmatpush1.msra.mxu0 0.0
    %1149 = vmatprep.subr.mxu0 0.0
    %1150 = vmatpush1.msra.mxu0 0.0
    %1151 = vmatprep.subr.mxu0 0.0
    %1152 = vmatpush1.msra.mxu0 0.0
    %1153 = vmatprep.subr.mxu0 0.0
    %1154 = vmatpush1.msra.mxu0 0.0
    %1155 = vmatprep.subr.mxu0 0.0
    %1156 = vmatpush1.msra.mxu0 0.0
    %1157 = vmatprep.subr.mxu0 0.0
    %1158 = vmatpush1.msra.mxu0 %v360
    %1159 = vmatprep.subr.mxu0 0.0
    %1160 = vmatpush2.msra.mxu0 0.0
    %1161 = vmatprep.subr.mxu0 0.0
    %1162 = vmatpush2.msra.mxu0 0.0
    %1163 = vmatprep.subr.mxu0 0.0
    %1164 = vmatpush2.msra.mxu0 0.0
    %1165 = vmatprep.subr.mxu0 0.0
    %1166 = vmatpush2.msra.mxu0 0.0
    %1167 = vmatprep.subr.mxu0 0.0
    %1168 = vmatpush2.msra.mxu0 0.0
    %1169 = vmatprep.subr.mxu0 0.0
    %1170 = vmatpush2.msra.mxu0 0.0
    %1171 = vmatprep.subr.mxu0 0.0
    %1172 = vmatpush2.msra.mxu0 0.0
    %1173 = vmatprep.subr.mxu0 0.0
    %1174 = vmatpush2.msra.mxu0 0.0
    %1175 = vmatprep.subr.mxu0 0.0
    %1176 = vmatpush2.msra.mxu0 0.0
    %1177 = vmatprep.subr.mxu0 0.0
    %1178 = vmatpush2.msra.mxu0 0.0
    %1179 = vmatprep.subr.mxu0 0.0
    %1180 = vmatpush2.msra.mxu0 0.0
    %1181 = vmatprep.subr.mxu0 0.0
    %1182 = vmatpush2.msra.mxu0 0.0
    %1183 = vmatprep.subr.mxu0 0.0
    %1184 = vmatpush2.msra.mxu0 0.0
    %1185 = vmatprep.subr.mxu0 0.0
    %1186 = vmatpush2.msra.mxu0 0.0
    %1187 = vmatprep.subr.mxu0 0.0
    %1188 = vmatpush2.msra.mxu0 0.0
    %1189 = vmatprep.subr.mxu0 0.0
    %1190 = vmatpush2.msra.mxu0 0.0
    %1191 = vmatprep.mubr.f32.mxu0 0.0
    %1192 = vmatmul.mubr.f32.gmra.mxu0 %v1125
    %v1193 = vpop.f32.mrf.mxu0
    %v1194 = vadd.f32 0.0, %v1193
    %v1195 = vpop.f32.mrf.mxu0
    %1196 = vdwg.mxu0
    %1197 = vrot.lane.b32.xlu0 %v172, 120
    %v1198 = vpop.permute.xlu0 %1197
    %1199 = vrot.lane.b32.xlu0 %v266, 120
    %v1200 = vpop.permute.xlu0 %1199
    %v1201 = vsel %vm363, %v1198, 0
    %v1203 = vsel %vm363, %v1200, 0
    %1205 = vmatprep.subr.mxu0 0.0
    %1206 = vmatpush1.xpose.msra.mxu0 0.0
    %1207 = vmatprep.subr.mxu0 0.0
    %1208 = vmatpush1.xpose.msra.mxu0 0.0
    %1209 = vmatprep.subr.mxu0 0.0
    %1210 = vmatpush1.xpose.msra.mxu0 0.0
    %1211 = vmatprep.subr.mxu0 0.0
    %1212 = vmatpush1.xpose.msra.mxu0 0.0
    %1213 = vmatprep.subr.mxu0 0.0
    %1214 = vmatpush1.xpose.msra.mxu0 0.0
    %1215 = vmatprep.subr.mxu0 0.0
    %1216 = vmatpush1.xpose.msra.mxu0 0.0
    %1217 = vmatprep.subr.mxu0 0.0
    %1218 = vmatpush1.xpose.msra.mxu0 0.0
    %1219 = vmatprep.subr.mxu0 0.0
    %1220 = vmatpush1.xpose.msra.mxu0 0.0
    %1221 = vmatprep.subr.mxu0 0.0
    %1222 = vmatpush1.xpose.msra.mxu0 0.0
    %1223 = vmatprep.subr.mxu0 0.0
    %1224 = vmatpush1.xpose.msra.mxu0 0.0
    %1225 = vmatprep.subr.mxu0 0.0
    %1226 = vmatpush1.xpose.msra.mxu0 0.0
    %1227 = vmatprep.subr.mxu0 0.0
    %1228 = vmatpush1.xpose.msra.mxu0 0.0
    %1229 = vmatprep.subr.mxu0 0.0
    %1230 = vmatpush1.xpose.msra.mxu0 0.0
    %1231 = vmatprep.subr.mxu0 0.0
    %1232 = vmatpush1.xpose.msra.mxu0 0.0
    %1233 = vmatprep.subr.mxu0 0.0
    %1234 = vmatpush1.xpose.msra.mxu0 0.0
    %1235 = vmatprep.subr.mxu0 0.0
    %1236 = vmatpush1.xpose.msra.mxu0 %v1203
    %1237 = vmatprep.subr.mxu0 0.0
    %1238 = vmatpush2.xpose.msra.mxu0 0.0
    %1239 = vmatprep.subr.mxu0 0.0
    %1240 = vmatpush2.xpose.msra.mxu0 0.0
    %1241 = vmatprep.subr.mxu0 0.0
    %1242 = vmatpush2.xpose.msra.mxu0 0.0
    %1243 = vmatprep.subr.mxu0 0.0
    %1244 = vmatpush2.xpose.msra.mxu0 0.0
    %1245 = vmatprep.subr.mxu0 0.0
    %1246 = vmatpush2.xpose.msra.mxu0 0.0
    %1247 = vmatprep.subr.mxu0 0.0
    %1248 = vmatpush2.xpose.msra.mxu0 0.0
    %1249 = vmatprep.subr.mxu0 0.0
    %1250 = vmatpush2.xpose.msra.mxu0 0.0
    %1251 = vmatprep.subr.mxu0 0.0
    %1252 = vmatpush2.xpose.msra.mxu0 0.0
    %1253 = vmatprep.subr.mxu0 0.0
    %1254 = vmatpush2.xpose.msra.mxu0 0.0
    %1255 = vmatprep.subr.mxu0 0.0
    %1256 = vmatpush2.xpose.msra.mxu0 0.0
    %1257 = vmatprep.subr.mxu0 0.0
    %1258 = vmatpush2.xpose.msra.mxu0 0.0
    %1259 = vmatprep.subr.mxu0 0.0
    %1260 = vmatpush2.xpose.msra.mxu0 0.0
    %1261 = vmatprep.subr.mxu0 0.0
    %1262 = vmatpush2.xpose.msra.mxu0 0.0
    %1263 = vmatprep.subr.mxu0 0.0
    %1264 = vmatpush2.xpose.msra.mxu0 0.0
    %1265 = vmatprep.subr.mxu0 0.0
    %1266 = vmatpush2.xpose.msra.mxu0 0.0
    %1267 = vmatprep.subr.mxu0 0.0
    %1268 = vmatpush2.xpose.msra.mxu0 0.0
    %1269 = vmatprep.mubr.f32.mxu0 0.0
    %1270 = vmatmul.mubr.f32.gmra.mxu0 %v1201
    %v1271 = vpop.f32.mrf.mxu0
    %v1272 = vadd.f32 0.0, %v1271
    %v1273 = vpop.f32.mrf.mxu0
    %1274 = vdwg.mxu0
    %v1275 = vsel %vm363, %v1272, -inf
    %1276 = vmax.xlane.f32.xlu0 %v1275
    %v1277 = vpop.xlane.xlu0 %1276
    %v1278 = vsub.f32 %v1272, %v1277
    %v1279 = vmul.f32 %v1278, 1.442695
    %v1280 = vpow.pop %v1279
    %v1281 = vsel %vm363, %v1280, 0.0
    %1282 = vadd.xlane.f32.xlu0 %v1281
    %v1283 = vpop.xlane.xlu0 %1282
    %v1284 = vrcp.pop %v1283
    %v1285 = vmul.f32 %v1280, %v1284
    %1287 = vrot.lane.b32.xlu0 %v360, 120
    %v1288 = vpop.permute.xlu0 %1287
    %v1291 = vsel %vm363, %v1285, 0
    %1293 = vmatprep.subr.mxu0 0.0
    %1294 = vmatpush1.msra.mxu0 0.0
    %1295 = vmatprep.subr.mxu0 0.0
    %1296 = vmatpush1.msra.mxu0 0.0
    %1297 = vmatprep.subr.mxu0 0.0
    %1298 = vmatpush1.msra.mxu0 0.0
    %1299 = vmatprep.subr.mxu0 0.0
    %1300 = vmatpush1.msra.mxu0 0.0
    %1301 = vmatprep.subr.mxu0 0.0
    %1302 = vmatpush1.msra.mxu0 0.0
    %1303 = vmatprep.subr.mxu0 0.0
    %1304 = vmatpush1.msra.mxu0 0.0
    %1305 = vmatprep.subr.mxu0 0.0
    %1306 = vmatpush1.msra.mxu0 0.0
    %1307 = vmatprep.subr.mxu0 0.0
    %1308 = vmatpush1.msra.mxu0 0.0
    %1309 = vmatprep.subr.mxu0 0.0
    %1310 = vmatpush1.msra.mxu0 0.0
    %1311 = vmatprep.subr.mxu0 0.0
    %1312 = vmatpush1.msra.mxu0 0.0
    %1313 = vmatprep.subr.mxu0 0.0
    %1314 = vmatpush1.msra.mxu0 0.0
    %1315 = vmatprep.subr.mxu0 0.0
    %1316 = vmatpush1.msra.mxu0 0.0
    %1317 = vmatprep.subr.mxu0 0.0
    %1318 = vmatpush1.msra.mxu0 0.0
    %1319 = vmatprep.subr.mxu0 0.0
    %1320 = vmatpush1.msra.mxu0 0.0
    %1321 = vmatprep.subr.mxu0 0.0
    %1322 = vmatpush1.msra.mxu0 0.0
    %1323 = vmatprep.subr.mxu0 0.0
    %1324 = vmatpush1.msra.mxu0 %v1288
    %1325 = vmatprep.subr.mxu0 0.0
    %1326 = vmatpush2.msra.mxu0 0.0
    %1327 = vmatprep.subr.mxu0 0.0
    %1328 = vmatpush2.msra.mxu0 0.0
    %1329 = vmatprep.subr.mxu0 0.0
    %1330 = vmatpush2.msra.mxu0 0.0
    %1331 = vmatprep.subr.mxu0 0.0
    %1332 = vmatpush2.msra.mxu0 0.0
    %1333 = vmatprep.subr.mxu0 0.0
    %1334 = vmatpush2.msra.mxu0 0.0
    %1335 = vmatprep.subr.mxu0 0.0
    %1336 = vmatpush2.msra.mxu0 0.0
    %1337 = vmatprep.subr.mxu0 0.0
    %1338 = vmatpush2.msra.mxu0 0.0
    %1339 = vmatprep.subr.mxu0 0.0
    %1340 = vmatpush2.msra.mxu0 0.0
    %1341 = vmatprep.subr.mxu0 0.0
    %1342 = vmatpush2.msra.mxu0 0.0
    %1343 = vmatprep.subr.mxu0 0.0
    %1344 = vmatpush2.msra.mxu0 0.0
    %1345 = vmatprep.subr.mxu0 0.0
    %1346 = vmatpush2.msra.mxu0 0.0
    %1347 = vmatprep.subr.mxu0 0.0
    %1348 = vmatpush2.msra.mxu0 0.0
    %1349 = vmatprep.subr.mxu0 0.0
    %1350 = vmatpush2.msra.mxu0 0.0
    %1351 = vmatprep.subr.mxu0 0.0
    %1352 = vmatpush2.msra.mxu0 0.0
    %1353 = vmatprep.subr.mxu0 0.0
    %1354 = vmatpush2.msra.mxu0 0.0
    %1355 = vmatprep.subr.mxu0 0.0
    %1356 = vmatpush2.msra.mxu0 0.0
    %1357 = vmatprep.mubr.f32.mxu0 0.0
    %1358 = vmatmul.mubr.f32.gmra.mxu0 %v1291
    %v1359 = vpop.f32.mrf.mxu0
    %v1360 = vadd.f32 0.0, %v1359
    %v1361 = vpop.f32.mrf.mxu0
    %1362 = vdwg.mxu0
    %1363 = vrot.lane.b32.xlu0 %v172, 112
    %v1364 = vpop.permute.xlu0 %1363
    %1365 = vrot.lane.b32.xlu0 %v266, 112
    %v1366 = vpop.permute.xlu0 %1365
    %v1367 = vsel %vm363, %v1364, 0
    %v1369 = vsel %vm363, %v1366, 0
    %1371 = vmatprep.subr.mxu0 0.0
    %1372 = vmatpush1.xpose.msra.mxu0 0.0
    %1373 = vmatprep.subr.mxu0 0.0
    %1374 = vmatpush1.xpose.msra.mxu0 0.0
    %1375 = vmatprep.subr.mxu0 0.0
    %1376 = vmatpush1.xpose.msra.mxu0 0.0
    %1377 = vmatprep.subr.mxu0 0.0
    %1378 = vmatpush1.xpose.msra.mxu0 0.0
    %1379 = vmatprep.subr.mxu0 0.0
    %1380 = vmatpush1.xpose.msra.mxu0 0.0
    %1381 = vmatprep.subr.mxu0 0.0
    %1382 = vmatpush1.xpose.msra.mxu0 0.0
    %1383 = vmatprep.subr.mxu0 0.0
    %1384 = vmatpush1.xpose.msra.mxu0 0.0
    %1385 = vmatprep.subr.mxu0 0.0
    %1386 = vmatpush1.xpose.msra.mxu0 0.0
    %1387 = vmatprep.subr.mxu0 0.0
    %1388 = vmatpush1.xpose.msra.mxu0 0.0
    %1389 = vmatprep.subr.mxu0 0.0
    %1390 = vmatpush1.xpose.msra.mxu0 0.0
    %1391 = vmatprep.subr.mxu0 0.0
    %1392 = vmatpush1.xpose.msra.mxu0 0.0
    %1393 = vmatprep.subr.mxu0 0.0
    %1394 = vmatpush1.xpose.msra.mxu0 0.0
    %1395 = vmatprep.subr.mxu0 0.0
    %1396 = vmatpush1.xpose.msra.mxu0 0.0
    %1397 = vmatprep.subr.mxu0 0.0
    %1398 = vmatpush1.xpose.msra.mxu0 0.0
    %1399 = vmatprep.subr.mxu0 0.0
    %1400 = vmatpush1.xpose.msra.mxu0 0.0
    %1401 = vmatprep.subr.mxu0 0.0
    %1402 = vmatpush1.xpose.msra.mxu0 %v1369
    %1403 = vmatprep.subr.mxu0 0.0
    %1404 = vmatpush2.xpose.msra.mxu0 0.0
    %1405 = vmatprep.subr.mxu0 0.0
    %1406 = vmatpush2.xpose.msra.mxu0 0.0
    %1407 = vmatprep.subr.mxu0 0.0
    %1408 = vmatpush2.xpose.msra.mxu0 0.0
    %1409 = vmatprep.subr.mxu0 0.0
    %1410 = vmatpush2.xpose.msra.mxu0 0.0
    %1411 = vmatprep.subr.mxu0 0.0
    %1412 = vmatpush2.xpose.msra.mxu0 0.0
    %1413 = vmatprep.subr.mxu0 0.0
    %1414 = vmatpush2.xpose.msra.mxu0 0.0
    %1415 = vmatprep.subr.mxu0 0.0
    %1416 = vmatpush2.xpose.msra.mxu0 0.0
    %1417 = vmatprep.subr.mxu0 0.0
    %1418 = vmatpush2.xpose.msra.mxu0 0.0
    %1419 = vmatprep.subr.mxu0 0.0
    %1420 = vmatpush2.xpose.msra.mxu0 0.0
    %1421 = vmatprep.subr.mxu0 0.0
    %1422 = vmatpush2.xpose.msra.mxu0 0.0
    %1423 = vmatprep.subr.mxu0 0.0
    %1424 = vmatpush2.xpose.msra.mxu0 0.0
    %1425 = vmatprep.subr.mxu0 0.0
    %1426 = vmatpush2.xpose.msra.mxu0 0.0
    %1427 = vmatprep.subr.mxu0 0.0
    %1428 = vmatpush2.xpose.msra.mxu0 0.0
    %1429 = vmatprep.subr.mxu0 0.0
    %1430 = vmatpush2.xpose.msra.mxu0 0.0
    %1431 = vmatprep.subr.mxu0 0.0
    %1432 = vmatpush2.xpose.msra.mxu0 0.0
    %1433 = vmatprep.subr.mxu0 0.0
    %1434 = vmatpush2.xpose.msra.mxu0 0.0
    %1435 = vmatprep.mubr.f32.mxu0 0.0
    %1436 = vmatmul.mubr.f32.gmra.mxu0 %v1367
    %v1437 = vpop.f32.mrf.mxu0
    %v1438 = vadd.f32 0.0, %v1437
    %v1439 = vpop.f32.mrf.mxu0
    %1440 = vdwg.mxu0
    %v1441 = vsel %vm363, %v1438, -inf
    %1442 = vmax.xlane.f32.xlu0 %v1441
    %v1443 = vpop.xlane.xlu0 %1442
    %v1444 = vsub.f32 %v1438, %v1443
    %v1445 = vmul.f32 %v1444, 1.442695
    %v1446 = vpow.pop %v1445
    %v1447 = vsel %vm363, %v1446, 0.0
    %1448 = vadd.xlane.f32.xlu0 %v1447
    %v1449 = vpop.xlane.xlu0 %1448
    %v1450 = vrcp.pop %v1449
    %v1451 = vmul.f32 %v1446, %v1450
    %1452 = vrot.lane.b32.xlu0 %v360, 112
    %v1453 = vpop.permute.xlu0 %1452
    %v1456 = vsel %vm363, %v1451, 0
    %1458 = vmatprep.subr.mxu0 0.0
    %1459 = vmatpush1.msra.mxu0 0.0
    %1460 = vmatprep.subr.mxu0 0.0
    %1461 = vmatpush1.msra.mxu0 0.0
    %1462 = vmatprep.subr.mxu0 0.0
    %1463 = vmatpush1.msra.mxu0 0.0
    %1464 = vmatprep.subr.mxu0 0.0
    %1465 = vmatpush1.msra.mxu0 0.0
    %1466 = vmatprep.subr.mxu0 0.0
    %1467 = vmatpush1.msra.mxu0 0.0
    %1468 = vmatprep.subr.mxu0 0.0
    %1469 = vmatpush1.msra.mxu0 0.0
    %1470 = vmatprep.subr.mxu0 0.0
    %1471 = vmatpush1.msra.mxu0 0.0
    %1472 = vmatprep.subr.mxu0 0.0
    %1473 = vmatpush1.msra.mxu0 0.0
    %1474 = vmatprep.subr.mxu0 0.0
    %1475 = vmatpush1.msra.mxu0 0.0
    %1476 = vmatprep.subr.mxu0 0.0
    %1477 = vmatpush1.msra.mxu0 0.0
    %1478 = vmatprep.subr.mxu0 0.0
    %1479 = vmatpush1.msra.mxu0 0.0
    %1480 = vmatprep.subr.mxu0 0.0
    %1481 = vmatpush1.msra.mxu0 0.0
    %1482 = vmatprep.subr.mxu0 0.0
    %1483 = vmatpush1.msra.mxu0 0.0
    %1484 = vmatprep.subr.mxu0 0.0
    %1485 = vmatpush1.msra.mxu0 0.0
    %1486 = vmatprep.subr.mxu0 0.0
    %1487 = vmatpush1.msra.mxu0 0.0
    %1488 = vmatprep.subr.mxu0 0.0
    %1489 = vmatpush1.msra.mxu0 %v1453
    %1490 = vmatprep.subr.mxu0 0.0
    %1491 = vmatpush2.msra.mxu0 0.0
    %1492 = vmatprep.subr.mxu0 0.0
    %1493 = vmatpush2.msra.mxu0 0.0
    %1494 = vmatprep.subr.mxu0 0.0
    %1495 = vmatpush2.msra.mxu0 0.0
    %1496 = vmatprep.subr.mxu0 0.0
    %1497 = vmatpush2.msra.mxu0 0.0
    %1498 = vmatprep.subr.mxu0 0.0
    %1499 = vmatpush2.msra.mxu0 0.0
    %1500 = vmatprep.subr.mxu0 0.0
    %1501 = vmatpush2.msra.mxu0 0.0
    %1502 = vmatprep.subr.mxu0 0.0
    %1503 = vmatpush2.msra.mxu0 0.0
    %1504 = vmatprep.subr.mxu0 0.0
    %1505 = vmatpush2.msra.mxu0 0.0
    %1506 = vmatprep.subr.mxu0 0.0
    %1507 = vmatpush2.msra.mxu0 0.0
    %1508 = vmatprep.subr.mxu0 0.0
    %1509 = vmatpush2.msra.mxu0 0.0
    %1510 = vmatprep.subr.mxu0 0.0
    %1511 = vmatpush2.msra.mxu0 0.0
    %1512 = vmatprep.subr.mxu0 0.0
    %1513 = vmatpush2.msra.mxu0 0.0
    %1514 = vmatprep.subr.mxu0 0.0
    %1515 = vmatpush2.msra.mxu0 0.0
    %1516 = vmatprep.subr.mxu0 0.0
    %1517 = vmatpush2.msra.mxu0 0.0
    %1518 = vmatprep.subr.mxu0 0.0
    %1519 = vmatpush2.msra.mxu0 0.0
    %1520 = vmatprep.subr.mxu0 0.0
    %1521 = vmatpush2.msra.mxu0 0.0
    %1522 = vmatprep.mubr.f32.mxu0 0.0
    %1523 = vmatmul.mubr.f32.gmra.mxu0 %v1456
    %v1524 = vpop.f32.mrf.mxu0
    %v1525 = vadd.f32 0.0, %v1524
    %v1526 = vpop.f32.mrf.mxu0
    %1527 = vdwg.mxu0
    %1528 = vrot.lane.b32.xlu0 %v172, 104
    %v1529 = vpop.permute.xlu0 %1528
    %1530 = vrot.lane.b32.xlu0 %v266, 104
    %v1531 = vpop.permute.xlu0 %1530
    %v1532 = vsel %vm363, %v1529, 0
    %v1534 = vsel %vm363, %v1531, 0
    %1536 = vmatprep.subr.mxu0 0.0
    %1537 = vmatpush1.xpose.msra.mxu0 0.0
    %1538 = vmatprep.subr.mxu0 0.0
    %1539 = vmatpush1.xpose.msra.mxu0 0.0
    %1540 = vmatprep.subr.mxu0 0.0
    %1541 = vmatpush1.xpose.msra.mxu0 0.0
    %1542 = vmatprep.subr.mxu0 0.0
    %1543 = vmatpush1.xpose.msra.mxu0 0.0
    %1544 = vmatprep.subr.mxu0 0.0
    %1545 = vmatpush1.xpose.msra.mxu0 0.0
    %1546 = vmatprep.subr.mxu0 0.0
    %1547 = vmatpush1.xpose.msra.mxu0 0.0
    %1548 = vmatprep.subr.mxu0 0.0
    %1549 = vmatpush1.xpose.msra.mxu0 0.0
    %1550 = vmatprep.subr.mxu0 0.0
    %1551 = vmatpush1.xpose.msra.mxu0 0.0
    %1552 = vmatprep.subr.mxu0 0.0
    %1553 = vmatpush1.xpose.msra.mxu0 0.0
    %1554 = vmatprep.subr.mxu0 0.0
    %1555 = vmatpush1.xpose.msra.mxu0 0.0
    %1556 = vmatprep.subr.mxu0 0.0
    %1557 = vmatpush1.xpose.msra.mxu0 0.0
    %1558 = vmatprep.subr.mxu0 0.0
    %1559 = vmatpush1.xpose.msra.mxu0 0.0
    %1560 = vmatprep.subr.mxu0 0.0
    %1561 = vmatpush1.xpose.msra.mxu0 0.0
    %1562 = vmatprep.subr.mxu0 0.0
    %1563 = vmatpush1.xpose.msra.mxu0 0.0
    %1564 = vmatprep.subr.mxu0 0.0
    %1565 = vmatpush1.xpose.msra.mxu0 0.0
    %1566 = vmatprep.subr.mxu0 0.0
    %1567 = vmatpush1.xpose.msra.mxu0 %v1534
    %1568 = vmatprep.subr.mxu0 0.0
    %1569 = vmatpush2.xpose.msra.mxu0 0.0
    %1570 = vmatprep.subr.mxu0 0.0
    %1571 = vmatpush2.xpose.msra.mxu0 0.0
    %1572 = vmatprep.subr.mxu0 0.0
    %1573 = vmatpush2.xpose.msra.mxu0 0.0
    %1574 = vmatprep.subr.mxu0 0.0
    %1575 = vmatpush2.xpose.msra.mxu0 0.0
    %1576 = vmatprep.subr.mxu0 0.0
    %1577 = vmatpush2.xpose.msra.mxu0 0.0
    %1578 = vmatprep.subr.mxu0 0.0
    %1579 = vmatpush2.xpose.msra.mxu0 0.0
    %1580 = vmatprep.subr.mxu0 0.0
    %1581 = vmatpush2.xpose.msra.mxu0 0.0
    %1582 = vmatprep.subr.mxu0 0.0
    %1583 = vmatpush2.xpose.msra.mxu0 0.0
    %1584 = vmatprep.subr.mxu0 0.0
    %1585 = vmatpush2.xpose.msra.mxu0 0.0
    %1586 = vmatprep.subr.mxu0 0.0
    %1587 = vmatpush2.xpose.msra.mxu0 0.0
    %1588 = vmatprep.subr.mxu0 0.0
    %1589 = vmatpush2.xpose.msra.mxu0 0.0
    %1590 = vmatprep.subr.mxu0 0.0
    %1591 = vmatpush2.xpose.msra.mxu0 0.0
    %1592 = vmatprep.subr.mxu0 0.0
    %1593 = vmatpush2.xpose.msra.mxu0 0.0
    %1594 = vmatprep.subr.mxu0 0.0
    %1595 = vmatpush2.xpose.msra.mxu0 0.0
    %1596 = vmatprep.subr.mxu0 0.0
    %1597 = vmatpush2.xpose.msra.mxu0 0.0
    %1598 = vmatprep.subr.mxu0 0.0
    %1599 = vmatpush2.xpose.msra.mxu0 0.0
    %1600 = vmatprep.mubr.f32.mxu0 0.0
    %1601 = vmatmul.mubr.f32.gmra.mxu0 %v1532
    %v1602 = vpop.f32.mrf.mxu0
    %v1603 = vadd.f32 0.0, %v1602
    %v1604 = vpop.f32.mrf.mxu0
    %1605 = vdwg.mxu0
    %v1606 = vsel %vm363, %v1603, -inf
    %1607 = vmax.xlane.f32.xlu0 %v1606
    %v1608 = vpop.xlane.xlu0 %1607
    %v1609 = vsub.f32 %v1603, %v1608
    %v1610 = vmul.f32 %v1609, 1.442695
    %v1611 = vpow.pop %v1610
    %v1612 = vsel %vm363, %v1611, 0.0
    %1613 = vadd.xlane.f32.xlu0 %v1612
    %v1614 = vpop.xlane.xlu0 %1613
    %v1615 = vrcp.pop %v1614
    %v1616 = vmul.f32 %v1611, %v1615
    %1617 = vrot.lane.b32.xlu0 %v360, 104
    %v1618 = vpop.permute.xlu0 %1617
    %v1621 = vsel %vm363, %v1616, 0
    %1623 = vmatprep.subr.mxu0 0.0
    %1624 = vmatpush1.msra.mxu0 0.0
    %1625 = vmatprep.subr.mxu0 0.0
    %1626 = vmatpush1.msra.mxu0 0.0
    %1627 = vmatprep.subr.mxu0 0.0
    %1628 = vmatpush1.msra.mxu0 0.0
    %1629 = vmatprep.subr.mxu0 0.0
    %1630 = vmatpush1.msra.mxu0 0.0
    %1631 = vmatprep.subr.mxu0 0.0
    %1632 = vmatpush1.msra.mxu0 0.0
    %1633 = vmatprep.subr.mxu0 0.0
    %1634 = vmatpush1.msra.mxu0 0.0
    %1635 = vmatprep.subr.mxu0 0.0
    %1636 = vmatpush1.msra.mxu0 0.0
    %1637 = vmatprep.subr.mxu0 0.0
    %1638 = vmatpush1.msra.mxu0 0.0
    %1639 = vmatprep.subr.mxu0 0.0
    %1640 = vmatpush1.msra.mxu0 0.0
    %1641 = vmatprep.subr.mxu0 0.0
    %1642 = vmatpush1.msra.mxu0 0.0
    %1643 = vmatprep.subr.mxu0 0.0
    %1644 = vmatpush1.msra.mxu0 0.0
    %1645 = vmatprep.subr.mxu0 0.0
    %1646 = vmatpush1.msra.mxu0 0.0
    %1647 = vmatprep.subr.mxu0 0.0
    %1648 = vmatpush1.msra.mxu0 0.0
    %1649 = vmatprep.subr.mxu0 0.0
    %1650 = vmatpush1.msra.mxu0 0.0
    %1651 = vmatprep.subr.mxu0 0.0
    %1652 = vmatpush1.msra.mxu0 0.0
    %1653 = vmatprep.subr.mxu0 0.0
    %1654 = vmatpush1.msra.mxu0 %v1618
    %1655 = vmatprep.subr.mxu0 0.0
    %1656 = vmatpush2.msra.mxu0 0.0
    %1657 = vmatprep.subr.mxu0 0.0
    %1658 = vmatpush2.msra.mxu0 0.0
    %1659 = vmatprep.subr.mxu0 0.0
    %1660 = vmatpush2.msra.mxu0 0.0
    %1661 = vmatprep.subr.mxu0 0.0
    %1662 = vmatpush2.msra.mxu0 0.0
    %1663 = vmatprep.subr.mxu0 0.0
    %1664 = vmatpush2.msra.mxu0 0.0
    %1665 = vmatprep.subr.mxu0 0.0
    %1666 = vmatpush2.msra.mxu0 0.0
    %1667 = vmatprep.subr.mxu0 0.0
    %1668 = vmatpush2.msra.mxu0 0.0
    %1669 = vmatprep.subr.mxu0 0.0
    %1670 = vmatpush2.msra.mxu0 0.0
    %1671 = vmatprep.subr.mxu0 0.0
    %1672 = vmatpush2.msra.mxu0 0.0
    %1673 = vmatprep.subr.mxu0 0.0
    %1674 = vmatpush2.msra.mxu0 0.0
    %1675 = vmatprep.subr.mxu0 0.0
    %1676 = vmatpush2.msra.mxu0 0.0
    %1677 = vmatprep.subr.mxu0 0.0
    %1678 = vmatpush2.msra.mxu0 0.0
    %1679 = vmatprep.subr.mxu0 0.0
    %1680 = vmatpush2.msra.mxu0 0.0
    %1681 = vmatprep.subr.mxu0 0.0
    %1682 = vmatpush2.msra.mxu0 0.0
    %1683 = vmatprep.subr.mxu0 0.0
    %1684 = vmatpush2.msra.mxu0 0.0
    %1685 = vmatprep.subr.mxu0 0.0
    %1686 = vmatpush2.msra.mxu0 0.0
    %1687 = vmatprep.mubr.f32.mxu0 0.0
    %1688 = vmatmul.mubr.f32.gmra.mxu0 %v1621
    %v1689 = vpop.f32.mrf.mxu0
    %v1690 = vadd.f32 0.0, %v1689
    %v1691 = vpop.f32.mrf.mxu0
    %1692 = vdwg.mxu0
    %1694 = vrot.lane.b32.xlu0 %v1360, 8
    %v1695 = vpop.permute.xlu0 %1694
    %1698 = vrot.lane.b32.xlu0 %v1525, 16
    %v1699 = vpop.permute.xlu0 %1698
    %1702 = vrot.lane.b32.xlu0 %v1690, 24
    %v1703 = vpop.permute.xlu0 %1702
    %v1705 = vsel %vm363, %v1194, %v1695
    %v1706 = vsel %vm1033, %v1705, %v1699
    %v1707 = vsel %vm1035, %v1706, %v1703
    %s1708 = scalar_lea.vmem [#allocation8], 96
    %v1709 = vld [vmem:[%s1708] sm:$0xff]
    %v1710 = vld [vmem:[%s1708 + $0x8] sm:$0xff]
    %v1711 = vld [vmem:[%s1708 + $0x10] sm:$0xff]
    %v1712 = vld [vmem:[%s1708 + $0x18] sm:$0xff]
    %s1713 = scalar_lea.vmem %s4, 3
    %v1714 = vld [vmem:[%s1713] sm:$0x1]
    %v1716 = vlaneseq
    %v1717 = vshrl.u32 %v1716, 7
    %v1718 = vsub.s32 0, %v1717
    %v1719 = vrot.slane %v1714, %v1718
    %v1722 = vsel %vm93, %v1036, 0
    %v1725 = vsel %vm93, %v1707, 0
    %1727 = vmatprep.subr.mxu0 0.0
    %1728 = vmatpush1.msra.mxu0 0.0
    %1729 = vmatprep.subr.mxu0 0.0
    %1730 = vmatpush1.msra.mxu0 0.0
    %1731 = vmatprep.subr.mxu0 0.0
    %1732 = vmatpush1.msra.mxu0 0.0
    %1733 = vmatprep.subr.mxu0 0.0
    %1734 = vmatpush1.msra.mxu0 0.0
    %1735 = vmatprep.subr.mxu0 0.0
    %1736 = vmatpush1.msra.mxu0 0.0
    %1737 = vmatprep.subr.mxu0 0.0
    %1738 = vmatpush1.msra.mxu0 0.0
    %1739 = vmatprep.subr.mxu0 0.0
    %1740 = vmatpush1.msra.mxu0 0.0
    %1741 = vmatprep.subr.mxu0 0.0
    %1742 = vmatpush1.msra.mxu0 0.0
    %1743 = vmatprep.subr.mxu0 0.0
    %1744 = vmatpush1.msra.mxu0 0.0
    %1745 = vmatprep.subr.mxu0 0.0
    %1746 = vmatpush1.msra.mxu0 0.0
    %1747 = vmatprep.subr.mxu0 0.0
    %1748 = vmatpush1.msra.mxu0 0.0
    %1749 = vmatprep.subr.mxu0 0.0
    %1750 = vmatpush1.msra.mxu0 0.0
    %1751 = vmatprep.subr.mxu0 0.0
    %1752 = vmatpush1.msra.mxu0 %v1712
    %1753 = vmatprep.subr.mxu0 0.0
    %1754 = vmatpush1.msra.mxu0 %v1711
    %1755 = vmatprep.subr.mxu0 0.0
    %1756 = vmatpush1.msra.mxu0 %v1710
    %1757 = vmatprep.subr.mxu0 0.0
    %1758 = vmatpush1.msra.mxu0 %v1709
    %1759 = vmatprep.subr.mxu0 0.0
    %1760 = vmatpush2.msra.mxu0 0.0
    %1761 = vmatprep.subr.mxu0 0.0
    %1762 = vmatpush2.msra.mxu0 0.0
    %1763 = vmatprep.subr.mxu0 0.0
    %1764 = vmatpush2.msra.mxu0 0.0
    %1765 = vmatprep.subr.mxu0 0.0
    %1766 = vmatpush2.msra.mxu0 0.0
    %1767 = vmatprep.subr.mxu0 0.0
    %1768 = vmatpush2.msra.mxu0 0.0
    %1769 = vmatprep.subr.mxu0 0.0
    %1770 = vmatpush2.msra.mxu0 0.0
    %1771 = vmatprep.subr.mxu0 0.0
    %1772 = vmatpush2.msra.mxu0 0.0
    %1773 = vmatprep.subr.mxu0 0.0
    %1774 = vmatpush2.msra.mxu0 0.0
    %1775 = vmatprep.subr.mxu0 0.0
    %1776 = vmatpush2.msra.mxu0 0.0
    %1777 = vmatprep.subr.mxu0 0.0
    %1778 = vmatpush2.msra.mxu0 0.0
    %1779 = vmatprep.subr.mxu0 0.0
    %1780 = vmatpush2.msra.mxu0 0.0
    %1781 = vmatprep.subr.mxu0 0.0
    %1782 = vmatpush2.msra.mxu0 0.0
    %1783 = vmatprep.subr.mxu0 0.0
    %1784 = vmatpush2.msra.mxu0 0.0
    %1785 = vmatprep.subr.mxu0 0.0
    %1786 = vmatpush2.msra.mxu0 0.0
    %1787 = vmatprep.subr.mxu0 0.0
    %1788 = vmatpush2.msra.mxu0 0.0
    %1789 = vmatprep.subr.mxu0 0.0
    %1790 = vmatpush2.msra.mxu0 0.0
    %1791 = vmatprep.mubr.f32.mxu0 0.0
    %1792 = vmatmul.mubr.f32.gmra.mxu0 %v1722
    %v1793 = vpop.f32.mrf.mxu0
    %v1794 = vadd.f32 %v1719, %v1793
    %v1795 = vpop.f32.mrf.mxu0
    %1796 = vmatprep.mubr.f32.mxu0 0.0
    %1797 = vmatmul.mubr.f32.gmra.mxu0 %v1725
    %v1798 = vpop.f32.mrf.mxu0
    %v1799 = vadd.f32 %v1719, %v1798
    %v1800 = vpop.f32.mrf.mxu0
    %1801 = vdwg.mxu0
    %1802 = vst.msk [vmem:[#allocation10] sm:$0xff] %vm93, %v1794
    %1803 = vst.msk [vmem:[#allocation10 + $0x8] sm:$0xff] %vm93, %v1799
    // Predicated region
    $region38: #{tpu_custom_call.1} parent=1 // pred_check
      _
    $region39: #{tpu_custom_call.1} parent=1 // pred_check_branch
      %1805 = sbr.rel (0) target = $region41
    $region40: #{tpu_custom_call.1} parent=1 // pred_region
      %s1807 = ssub.s32 256, 256
      %1808 = vsyncadd [#allocation4], %s1807
      %s1809 = sshll.u32 [#allocation10], 4
      %s1810 = int_to_ptr.vmem [resolvable:$true] %s1809
      %1815 = dma.vmem_to_hbm [thread:$0]  %s1810, 256, %s5, [#allocation4], 128, 128, 8
    $region41: #{tpu_custom_call.1} parent=1 // pred_fallthru
      _
    // Predicated region
    $region42: #{tpu_custom_call.1} parent=1 // pred_check
      _
    $region43: #{tpu_custom_call.1} parent=1 // pred_check_branch
      %1817 = sbr.rel (0) target = $region45
    $region44: #{tpu_custom_call.1} parent=1 // pred_region
      %1818 = dma.done [#allocation4], 256
    $region45: #{tpu_custom_call.1} parent=1 // pred_fallthru
      _
    %1819 = vsyncpa [#allocation3], 1
    %1820 = vsyncpa [#allocation6], 1
    %1821 = vsyncpa [#allocation9], 1
    %1822 = vsyncpa [#allocation4], 1

</llo_original>
